<compile_context>
chip_gen: v7x
topology: tpu7x:2x2x1
jax: 0.10.0
libtpu: 0.0.40
codegen_flags: <defaults>
</compile_context>

<pallas_src>
import functools

import jax
import jax.numpy as jnp
from jax.experimental import pallas as pl
from jax.experimental.pallas import tpu as pltpu

LANE = 128            # feature dims are zero-padded to multiples of this
ROW_ALIGN = 16        # row tiles kept multiples of 16 (bf16 sublane packing safe)
MAX_TILE_ROWS = 512   # largest row tile; well under the scoped-VMEM limit below
VMEM_LIMIT = 48 * 1024 * 1024   # explicit scoped VMEM, below v7x's 64 MiB physical


def _round_up(x, m):
    return (x + m - 1) // m * m


# ---------------------------------------------------------------------------
# Kernels
# ---------------------------------------------------------------------------
def _mlp3_kernel(x_ref, w1_ref, w2_ref, w3_ref, vec_ref, o_ref):
    """3 x (Linear(+folded BN scale) -> ReLU) + final BN shift, one row tile.

    x_ref : (TILE, D0)       bf16
    wX_ref: (D_{x-1}, D_x)   bf16 (BN scale pre-folded, lane padded)
    vec_ref: (4, DMAX)       f32  rows = [bias1', bias2', bias3', final shift]
    """
    vec = vec_ref[...]
    d1 = w1_ref.shape[1]
    d2 = w2_ref.shape[1]
    d3 = w3_ref.shape[1]

    h = jnp.dot(x_ref[...], w1_ref[...], preferred_element_type=jnp.float32)
    h = jnp.maximum(h + vec[0:1, :d1], 0.0)
    h = jnp.dot(h.astype(jnp.bfloat16), w2_ref[...],
                preferred_element_type=jnp.float32)
    h = jnp.maximum(h + vec[1:2, :d2], 0.0)
    h = jnp.dot(h.astype(jnp.bfloat16), w3_ref[...],
                preferred_element_type=jnp.float32)
    h = jnp.maximum(h + vec[2:3, :d3], 0.0)
    h = h + vec[3:4, :d3]          # last BN shift (cannot be folded forward)
    o_ref[...] = h.astype(o_ref.dtype)


def _conv_head_kernel(x_ref, w_ref, b_ref, o_ref):
    """relu(mean_t(Conv1d(.))) reformulated as ONE lane-dense matmul.

    x_ref: (TILE_B, S*C) bf16 -- MLP embeddings flattened per batch row
    w_ref: (S*C, O)      bf16 -- host-precomputed mean-of-taps weight
    b_ref: (1, O)        f32
    """
    y = jnp.dot(x_ref[...], w_ref[...], preferred_element_type=jnp.float32)
    o_ref[...] = jnp.maximum(y + b_ref[...], 0.0).astype(o_ref.dtype)


# ---------------------------------------------------------------------------
# Pallas wrappers
# ---------------------------------------------------------------------------
def mlp_forward(x2d, w_pads, vecs, *, out_dtype=jnp.float32):
    """x2d: (N, d_in) f32 -> (N_pad, OUT_pad) out_dtype (caller slices)."""
    n, d_in = x2d.shape
    assert len(w_pads) == 3
    d0 = w_pads[0].shape[0]
    d_out = w_pads[-1].shape[1]

    tile = min(MAX_TILE_ROWS, _round_up(n, ROW_ALIGN))
    n_pad = _round_up(n, tile)
    x = jnp.zeros((n_pad, d0), jnp.bfloat16).at[:n, :d_in].set(
        x2d.astype(jnp.bfloat16))

    in_specs = [pl.BlockSpec((tile, d0), lambda i: (i, 0))]
    for w in w_pads:
        in_specs.append(pl.BlockSpec(w.shape, lambda i: (0, 0)))
    in_specs.append(pl.BlockSpec(vecs.shape, lambda i: (0, 0)))

    flops = 2 * n_pad * sum(w.shape[0] * w.shape[1] for w in w_pads)
    bytes_accessed = (x.size * 2 + sum(w.size * 2 for w in w_pads)
                      + vecs.size * 4
                      + n_pad * d_out * jnp.dtype(out_dtype).itemsize)

    return pl.pallas_call(
        _mlp3_kernel,
        grid=(n_pad // tile,),
        in_specs=in_specs,
        out_specs=pl.BlockSpec((tile, d_out), lambda i: (i, 0)),
        out_shape=jax.ShapeDtypeStruct((n_pad, d_out), out_dtype),
        compiler_params=pltpu.CompilerParams(
            dimension_semantics=("parallel",),  # row tiles feed both v7x TCs
            vmem_limit_bytes=VMEM_LIMIT),
        cost_estimate=pl.CostEstimate(flops=int(flops), transcendentals=0,
                                      bytes_accessed=int(bytes_accessed)),
    )(x, *w_pads, vecs)


def conv_head(ctx_flat, w_eff_flat, bias_row):
    """ctx_flat: (B, S*C_pad) bf16 -> (B_pad, O_pad) f32 (caller slices)."""
    b_rows, k = ctx_flat.shape
    o_pad = w_eff_flat.shape[1]
    tile_b = min(256, _round_up(b_rows, ROW_ALIGN))
    b_pad = _round_up(b_rows, tile_b)
    x = jnp.zeros((b_pad, k), jnp.bfloat16).at[:b_rows].set(ctx_flat)

    flops = 2 * b_pad * k * o_pad
    bytes_accessed = (x.size * 2 + w_eff_flat.size * 2
                      + bias_row.size * 4 + b_pad * o_pad * 4)

    return pl.pallas_call(
        _conv_head_kernel,
        grid=(b_pad // tile_b,),
        in_specs=[pl.BlockSpec((tile_b, k), lambda i: (i, 0)),
                  pl.BlockSpec(w_eff_flat.shape, lambda i: (0, 0)),
                  pl.BlockSpec(bias_row.shape, lambda i: (0, 0))],
        out_specs=pl.BlockSpec((tile_b, o_pad), lambda i: (i, 0)),
        out_shape=jax.ShapeDtypeStruct((b_pad, o_pad), jnp.float32),
        compiler_params=pltpu.CompilerParams(
            dimension_semantics=("parallel",),
            vmem_limit_bytes=VMEM_LIMIT),
        cost_estimate=pl.CostEstimate(flops=int(flops), transcendentals=0,
                                      bytes_accessed=int(bytes_accessed)),
    )(x, w_eff_flat, bias_row)


# ---------------------------------------------------------------------------
# Host-side parameter preparation (fold BN, pad lanes, cast bf16)
# ---------------------------------------------------------------------------
def _fold_bn_into_linear(layers):
    """(W,b,scale,shift)x3 -> (W',b')x3 plus the final shift; needs scale>0."""
    folded_w, folded_b = [], []
    carry = None
    for (w, b, s, t) in layers:
        # relu(z)*s == relu(z*s) only for s >= 0.
        # TODO(synk): a trained BN gamma could be negative; that case would
        #             need a post-ReLU per-channel sign fix-up, not this fold.
        assert bool(jnp.all(s > 0)), "BN scale must be positive to fold into W"
        b_eff = b if carry is None else b + carry @ w
        folded_w.append(w * s[None, :])
        folded_b.append(b_eff * s)
        carry = t
    return folded_w, folded_b, carry


def _conv_mean_weight(w_tco, s_len):
    """W_eff[s] = (1/L) * sum_{k : 0 <= s-k < L} w[k]  (L = S - T + 1), so
       mean_p(conv1d(x))[b, o] == sum_{s,c} x[b, s, c] * W_eff[s, c, o]."""
    t, c, o = w_tco.shape
    l = s_len - t + 1
    assert l >= 1, "context length must be >= conv kernel size"
    rows = []
    for s in range(s_len):
        k_lo = max(0, s - l + 1)
        k_hi = min(t - 1, s)
        rows.append(jnp.sum(w_tco[k_lo:k_hi + 1], axis=0) / float(l))
    return jnp.stack(rows, axis=0)                       # (S, C, O)


def prepare_params(raw, s_ctx):
    def prep_branch(layers):
        assert len(layers) == 3, "_mlp3_kernel expects exactly 3 Linear layers"
        ws, bs, t_last = _fold_bn_into_linear(layers)
        dims = [ws[0].shape[0]] + [w.shape[1] for w in ws]
        pads = [_round_up(d, LANE) for d in dims]
        w_pads = []
        for i, w in enumerate(ws):
            wp = jnp.zeros((pads[i], pads[i + 1]), jnp.float32)
            wp = wp.at[:w.shape[0], :w.shape[1]].set(w)
            w_pads.append(wp.astype(jnp.bfloat16))
        dmax = max(pads[1:])
        vecs = jnp.zeros((4, dmax), jnp.float32)         # one stacked vector input
        for i, b in enumerate(bs):
            vecs = vecs.at[i, :b.shape[0]].set(b)
        vecs = vecs.at[3, :t_last.shape[0]].set(t_last)
        return w_pads, vecs

    goal_w, goal_vecs = prep_branch(raw["goal"])
    state_w, state_vecs = prep_branch(raw["state"])

    t, c, o = raw["conv_w_tco"].shape
    c_pad = goal_w[-1].shape[1]                          # == round_up(out_dim, 128)
    o_pad = _round_up(o, LANE)
    w_eff = _conv_mean_weight(raw["conv_w_tco"], s_ctx)  # (S, C, O)
    w_eff_p = jnp.zeros((s_ctx, c_pad, o_pad), jnp.float32).at[:, :c, :o].set(w_eff)
    conv_w = w_eff_p.reshape(s_ctx * c_pad, o_pad).astype(jnp.bfloat16)
    conv_b = jnp.zeros((1, o_pad), jnp.float32).at[0, :o].set(raw["conv_b"])

    return dict(goal_w=goal_w, goal_vecs=goal_vecs,
                state_w=state_w, state_vecs=state_vecs,
                conv_w=conv_w, conv_b=conv_b,
                out_dim=int(o), s_ctx=int(s_ctx), c_pad=int(c_pad))


# ---------------------------------------------------------------------------
# Forward
# ---------------------------------------------------------------------------
def goal_state_forward(prepped, context, frame):
    b, s_ctx, d_in = context.shape
    _, s_frm, _ = frame.shape
    assert s_ctx == prepped["s_ctx"], "conv weight folded for a fixed context length"
    out_dim = prepped["out_dim"]
    c_pad = prepped["c_pad"]

    # goal branch: MLP -> conv/mean/relu head (one matmul)
    g = mlp_forward(context.reshape(b * s_ctx, d_in),
                    prepped["goal_w"], prepped["goal_vecs"],
                    out_dtype=jnp.bfloat16)          # bf16: feeds a bf16 matmul
    g = g[:b * s_ctx].reshape(b, s_ctx * c_pad)      # row-major, layout-free reshape
    ctx_out = conv_head(g, prepped["conv_w"], prepped["conv_b"])[:b, :out_dim]

    # state branch: MLP only
    st = mlp_forward(frame.reshape(b * s_frm, d_in),
                     prepped["state_w"], prepped["state_vecs"],
                     out_dtype=jnp.float32)
    state_out = st[:b * s_frm, :out_dim].reshape(b, s_frm, out_dim)
    return ctx_out, state_out


# ---------------------------------------------------------------------------
# Deterministic synthetic parameter init (mirrors __init__ shapes)
# ---------------------------------------------------------------------------
def init_goal_state_params(key, in_dim, hidden, out_dim, t_taps):
    dims = [in_dim] + list(hidden) + [out_dim]
    keys = iter(jax.random.split(key, 128))
    eps = 1e-5

    def linear(din, dout):
        bound = 1.0 / float(din) ** 0.5
        w = jax.random.uniform(next(keys), (din, dout), jnp.float32, -bound, bound)
        b = jax.random.uniform(next(keys), (dout,), jnp.float32, -bound, bound)
        return w, b

    def folded_bn(d):
        gamma = jax.random.uniform(next(keys), (d,), jnp.float32, 0.5, 1.5)
        beta = 0.1 * jax.random.normal(next(keys), (d,), jnp.float32)
        run_mean = 0.05 * jax.random.normal(next(keys), (d,), jnp.float32)
        run_var = jax.random.uniform(next(keys), (d,), jnp.float32, 0.5, 1.5)
        scale = gamma / jnp.sqrt(run_var + eps)
        shift = beta - run_mean * scale
        return scale, shift

    params = {"goal": [], "state": []}
    for name in ("goal", "state"):
        for i in range(len(dims) - 1):
            w, b = linear(dims[i], dims[i + 1])
            scale, shift = folded_bn(dims[i + 1])
            params[name].append((w, b, scale, shift))

    # Conv1d(out_dim, out_dim, T): torch weight (O, C, T) -> layout (T, C, O)
    bound = 1.0 / float(out_dim * t_taps) ** 0.5
    wc = jax.random.uniform(next(keys), (out_dim, out_dim, t_taps),
                            jnp.float32, -bound, bound)
    bc = jax.random.uniform(next(keys), (out_dim,), jnp.float32, -bound, bound)
    params["conv_w_tco"] = jnp.transpose(wc, (2, 1, 0))
    params["conv_b"] = bc
    return params


# ---------------------------------------------------------------------------
# Pure-JAX f32 reference (original, unfolded semantics) for verification
# ---------------------------------------------------------------------------
def _ref_mlp(x, layers):
    for (w, b, s, t) in layers:
        x = jnp.maximum(x @ w + b, 0.0) * s + t
    return x


def _ref_forward(params, context, frame):
    ctx = _ref_mlp(context, params["goal"])                 # (B, S, O)
    w, b = params["conv_w_tco"], params["conv_b"]
    t_taps = w.shape[0]
    l = ctx.shape[1] - t_taps + 1
    y = sum(jnp.einsum("bsc,co->bso", ctx[:, k:k + l, :], w[k])
            for k in range(t_taps))
    ctx_out = jnp.maximum(y.mean(axis=1) + b, 0.0)          # (B, O)
    state_out = _ref_mlp(frame, params["state"])            # (B, S, O)
    return ctx_out, state_out


# ---------------------------------------------------------------------------
if __name__ == "__main__":
    IN_DIM, HIDDEN, OUT_DIM, T = 256, [128, 64], 64, 5
    B, S_CTX, S_FRAME = 2, 8, 12

    key = jax.random.PRNGKey(0)
    kp, kc, kf = jax.random.split(key, 3)
    raw = init_goal_state_params(kp, IN_DIM, HIDDEN, OUT_DIM, T)
    prepped = prepare_params(raw, S_CTX)

    context = jax.random.normal(kc, (B, S_CTX, IN_DIM), jnp.float32)
    frame = jax.random.normal(kf, (B, S_FRAME, IN_DIM), jnp.float32)

    fwd = jax.jit(functools.partial(goal_state_forward, prepped))
    ctx_out, state_out = fwd(context, frame)
    jax.block_until_ready((ctx_out, state_out))

    ref_ctx, ref_state = _ref_forward(raw, context, frame)
    assert ctx_out.shape == (B, OUT_DIM)
    assert state_out.shape == (B, S_FRAME, OUT_DIM)
    # bf16 matmul inputs (f32 accumulation) vs. an all-f32 reference:
    # compare at bf16-level tolerance.
    assert jnp.allclose(ctx_out, ref_ctx, atol=3e-2, rtol=3e-2), \
        float(jnp.max(jnp.abs(ctx_out - ref_ctx)))
    assert jnp.allclose(state_out, ref_state, atol=3e-2, rtol=3e-2), \
        float(jnp.max(jnp.abs(state_out - ref_state)))
    print("KERNEL_OK")
</pallas_src>

<mosaic_0001>
module attributes {stable_mosaic.version = 11 : i64} {
  func.func @_mlp3_kernel(%arg0: i32, %arg1: memref<16x256xbf16, #tpu.memory_space<vmem>>, %arg2: memref<256x128xbf16, #tpu.memory_space<vmem>>, %arg3: memref<128x128xbf16, #tpu.memory_space<vmem>>, %arg4: memref<128x128xbf16, #tpu.memory_space<vmem>>, %arg5: memref<4x128xf32, #tpu.memory_space<vmem>>, %arg6: memref<16x128xbf16, #tpu.memory_space<vmem>>) attributes {dimension_semantics = [#tpu.dimension_semantics<parallel>], iteration_bounds = array<i64: 1>, scalar_prefetch = 0 : i64, scratch_operands = 0 : i64, tpu.core_type = #tpu.core_type<tc>, window_params = [{transform_indices = @transform_0, window_bounds = array<i64: 16, 256>}, {pipeline_mode = #tpu.pipeline_mode<synchronous>, transform_indices = @transform_1, window_bounds = array<i64: 256, 128>}, {pipeline_mode = #tpu.pipeline_mode<synchronous>, transform_indices = @transform_2, window_bounds = array<i64: 128, 128>}, {pipeline_mode = #tpu.pipeline_mode<synchronous>, transform_indices = @transform_3, window_bounds = array<i64: 128, 128>}, {pipeline_mode = #tpu.pipeline_mode<synchronous>, transform_indices = @transform_4, window_bounds = array<i64: 4, 128>}, {transform_indices = @transform_5, window_bounds = array<i64: 16, 128>}]} {
    %c0 = arith.constant 0 : index
    %c0_0 = arith.constant 0 : index
    %0 = vector.load %arg5[%c0, %c0_0] : memref<4x128xf32, #tpu.memory_space<vmem>>, vector<4x128xf32>
    %c0_1 = arith.constant 0 : index
    %c0_2 = arith.constant 0 : index
    %1 = vector.load %arg1[%c0_1, %c0_2] : memref<16x256xbf16, #tpu.memory_space<vmem>>, vector<16x256xbf16>
    %c0_3 = arith.constant 0 : index
    %c0_4 = arith.constant 0 : index
    %2 = vector.load %arg2[%c0_3, %c0_4] : memref<256x128xbf16, #tpu.memory_space<vmem>>, vector<256x128xbf16>
    %cst = arith.constant dense<0.000000e+00> : vector<16x128xf32>
    %3 = tpu.matmul %1, %2, %cst {dimension_numbers = #tpu.dot_dimension_numbers<[1], [0], [0], [1], [0, 0, 1, 1], [], []>} : vector<16x256xbf16>, vector<256x128xbf16>, vector<16x128xf32> -> vector<16x128xf32>
    %4 = vector.extract_strided_slice %0 {offsets = [0, 0], sizes = [1, 128], strides = [1, 1]} : vector<4x128xf32> to vector<1x128xf32>
    %5 = vector.broadcast %4 : vector<1x128xf32> to vector<16x128xf32>
    %6 = arith.addf %3, %5 : vector<16x128xf32>
    %cst_5 = arith.constant 0.000000e+00 : f32
    %7 = vector.broadcast %cst_5 : f32 to vector<16x128xf32>
    %8 = arith.maximumf %6, %7 : vector<16x128xf32>
    %9 = arith.truncf %8 : vector<16x128xf32> to vector<16x128xbf16>
    %c0_6 = arith.constant 0 : index
    %c0_7 = arith.constant 0 : index
    %10 = vector.load %arg3[%c0_6, %c0_7] : memref<128x128xbf16, #tpu.memory_space<vmem>>, vector<128x128xbf16>
    %cst_8 = arith.constant dense<0.000000e+00> : vector<16x128xf32>
    %11 = tpu.matmul %9, %10, %cst_8 {dimension_numbers = #tpu.dot_dimension_numbers<[1], [0], [0], [1], [0, 0, 1, 1], [], []>} : vector<16x128xbf16>, vector<128x128xbf16>, vector<16x128xf32> -> vector<16x128xf32>
    %12 = vector.extract_strided_slice %0 {offsets = [1, 0], sizes = [1, 128], strides = [1, 1]} : vector<4x128xf32> to vector<1x128xf32>
    %13 = vector.broadcast %12 : vector<1x128xf32> to vector<16x128xf32>
    %14 = arith.addf %11, %13 : vector<16x128xf32>
    %cst_9 = arith.constant 0.000000e+00 : f32
    %15 = vector.broadcast %cst_9 : f32 to vector<16x128xf32>
    %16 = arith.maximumf %14, %15 : vector<16x128xf32>
    %17 = arith.truncf %16 : vector<16x128xf32> to vector<16x128xbf16>
    %c0_10 = arith.constant 0 : index
    %c0_11 = arith.constant 0 : index
    %18 = vector.load %arg4[%c0_10, %c0_11] : memref<128x128xbf16, #tpu.memory_space<vmem>>, vector<128x128xbf16>
    %cst_12 = arith.constant dense<0.000000e+00> : vector<16x128xf32>
    %19 = tpu.matmul %17, %18, %cst_12 {dimension_numbers = #tpu.dot_dimension_numbers<[1], [0], [0], [1], [0, 0, 1, 1], [], []>} : vector<16x128xbf16>, vector<128x128xbf16>, vector<16x128xf32> -> vector<16x128xf32>
    %20 = vector.extract_strided_slice %0 {offsets = [2, 0], sizes = [1, 128], strides = [1, 1]} : vector<4x128xf32> to vector<1x128xf32>
    %21 = vector.broadcast %20 : vector<1x128xf32> to vector<16x128xf32>
    %22 = arith.addf %19, %21 : vector<16x128xf32>
    %cst_13 = arith.constant 0.000000e+00 : f32
    %23 = vector.broadcast %cst_13 : f32 to vector<16x128xf32>
    %24 = arith.maximumf %22, %23 : vector<16x128xf32>
    %25 = vector.extract_strided_slice %0 {offsets = [3, 0], sizes = [1, 128], strides = [1, 1]} : vector<4x128xf32> to vector<1x128xf32>
    %26 = vector.broadcast %25 : vector<1x128xf32> to vector<16x128xf32>
    %27 = arith.addf %24, %26 : vector<16x128xf32>
    %28 = arith.truncf %27 : vector<16x128xf32> to vector<16x128xbf16>
    %c0_14 = arith.constant 0 : index
    %c0_15 = arith.constant 0 : index
    %29 = vector.load %arg6[%c0_14, %c0_15] : memref<16x128xbf16, #tpu.memory_space<vmem>>, vector<16x128xbf16>
    tpu.vector_store %arg6[%c0_14, %c0_15], %28 {strides = array<i32>} : memref<16x128xbf16, #tpu.memory_space<vmem>>, vector<16x128xbf16>,
    return
  }
  func.func @transform_0(%arg0: i32) -> (i32, i32) {
    %c0_i32 = arith.constant 0 : i32
    %c0_i32_0 = arith.constant 0 : i32
    return %arg0, %c0_i32 : i32, i32
  }
  func.func @transform_1(%arg0: i32) -> (i32, i32) {
    %c0_i32 = arith.constant 0 : i32
    %c0_i32_0 = arith.constant 0 : i32
    %c0_i32_1 = arith.constant 0 : i32
    return %c0_i32, %c0_i32_0 : i32, i32
  }
  func.func @transform_2(%arg0: i32) -> (i32, i32) {
    %c0_i32 = arith.constant 0 : i32
    %c0_i32_0 = arith.constant 0 : i32
    %c0_i32_1 = arith.constant 0 : i32
    return %c0_i32, %c0_i32_0 : i32, i32
  }
  func.func @transform_3(%arg0: i32) -> (i32, i32) {
    %c0_i32 = arith.constant 0 : i32
    %c0_i32_0 = arith.constant 0 : i32
    %c0_i32_1 = arith.constant 0 : i32
    return %c0_i32, %c0_i32_0 : i32, i32
  }
  func.func @transform_4(%arg0: i32) -> (i32, i32) {
    %c0_i32 = arith.constant 0 : i32
    %c0_i32_0 = arith.constant 0 : i32
    %c0_i32_1 = arith.constant 0 : i32
    return %c0_i32, %c0_i32_0 : i32, i32
  }
  func.func @transform_5(%arg0: i32) -> (i32, i32) {
    %c0_i32 = arith.constant 0 : i32
    %c0_i32_0 = arith.constant 0 : i32
    return %arg0, %c0_i32 : i32, i32
  }
}

module attributes {stable_mosaic.version = 11 : i64} {
  func.func @_conv_head_kernel(%arg0: i32, %arg1: memref<16x1024xbf16, #tpu.memory_space<vmem>>, %arg2: memref<1024x128xbf16, #tpu.memory_space<vmem>>, %arg3: memref<1x128xf32, #tpu.memory_space<vmem>>, %arg4: memref<16x128xf32, #tpu.memory_space<vmem>>) attributes {dimension_semantics = [#tpu.dimension_semantics<parallel>], iteration_bounds = array<i64: 1>, scalar_prefetch = 0 : i64, scratch_operands = 0 : i64, tpu.core_type = #tpu.core_type<tc>, window_params = [{transform_indices = @transform_0, window_bounds = array<i64: 16, 1024>}, {pipeline_mode = #tpu.pipeline_mode<synchronous>, transform_indices = @transform_1, window_bounds = array<i64: 1024, 128>}, {pipeline_mode = #tpu.pipeline_mode<synchronous>, transform_indices = @transform_2, window_bounds = array<i64: 1, 128>}, {transform_indices = @transform_3, window_bounds = array<i64: 16, 128>}]} {
    %c0 = arith.constant 0 : index
    %c0_0 = arith.constant 0 : index
    %0 = vector.load %arg1[%c0, %c0_0] : memref<16x1024xbf16, #tpu.memory_space<vmem>>, vector<16x1024xbf16>
    %c0_1 = arith.constant 0 : index
    %c0_2 = arith.constant 0 : index
    %1 = vector.load %arg2[%c0_1, %c0_2] : memref<1024x128xbf16, #tpu.memory_space<vmem>>, vector<1024x128xbf16>
    %cst = arith.constant dense<0.000000e+00> : vector<16x128xf32>
    %2 = tpu.matmul %0, %1, %cst {dimension_numbers = #tpu.dot_dimension_numbers<[1], [0], [0], [1], [0, 0, 1, 1], [], []>} : vector<16x1024xbf16>, vector<1024x128xbf16>, vector<16x128xf32> -> vector<16x128xf32>
    %c0_3 = arith.constant 0 : index
    %c0_4 = arith.constant 0 : index
    %3 = vector.load %arg3[%c0_3, %c0_4] : memref<1x128xf32, #tpu.memory_space<vmem>>, vector<1x128xf32>
    %4 = vector.broadcast %3 : vector<1x128xf32> to vector<16x128xf32>
    %5 = arith.addf %2, %4 : vector<16x128xf32>
    %cst_5 = arith.constant 0.000000e+00 : f32
    %6 = vector.broadcast %cst_5 : f32 to vector<16x128xf32>
    %7 = arith.maximumf %5, %6 : vector<16x128xf32>
    %c0_6 = arith.constant 0 : index
    %c0_7 = arith.constant 0 : index
    %8 = vector.load %arg4[%c0_6, %c0_7] : memref<16x128xf32, #tpu.memory_space<vmem>>, vector<16x128xf32>
    tpu.vector_store %arg4[%c0_6, %c0_7], %7 {strides = array<i32>} : memref<16x128xf32, #tpu.memory_space<vmem>>, vector<16x128xf32>,
    return
  }
  func.func @transform_0(%arg0: i32) -> (i32, i32) {
    %c0_i32 = arith.constant 0 : i32
    %c0_i32_0 = arith.constant 0 : i32
    return %arg0, %c0_i32 : i32, i32
  }
  func.func @transform_1(%arg0: i32) -> (i32, i32) {
    %c0_i32 = arith.constant 0 : i32
    %c0_i32_0 = arith.constant 0 : i32
    %c0_i32_1 = arith.constant 0 : i32
    return %c0_i32, %c0_i32_0 : i32, i32
  }
  func.func @transform_2(%arg0: i32) -> (i32, i32) {
    %c0_i32 = arith.constant 0 : i32
    %c0_i32_0 = arith.constant 0 : i32
    %c0_i32_1 = arith.constant 0 : i32
    return %c0_i32, %c0_i32_0 : i32, i32
  }
  func.func @transform_3(%arg0: i32) -> (i32, i32) {
    %c0_i32 = arith.constant 0 : i32
    %c0_i32_0 = arith.constant 0 : i32
    return %arg0, %c0_i32 : i32, i32
  }
}

module attributes {stable_mosaic.version = 11 : i64} {
  func.func @_mlp3_kernel(%arg0: i32, %arg1: memref<32x256xbf16, #tpu.memory_space<vmem>>, %arg2: memref<256x128xbf16, #tpu.memory_space<vmem>>, %arg3: memref<128x128xbf16, #tpu.memory_space<vmem>>, %arg4: memref<128x128xbf16, #tpu.memory_space<vmem>>, %arg5: memref<4x128xf32, #tpu.memory_space<vmem>>, %arg6: memref<32x128xf32, #tpu.memory_space<vmem>>) attributes {dimension_semantics = [#tpu.dimension_semantics<parallel>], iteration_bounds = array<i64: 1>, scalar_prefetch = 0 : i64, scratch_operands = 0 : i64, tpu.core_type = #tpu.core_type<tc>, window_params = [{transform_indices = @transform_0, window_bounds = array<i64: 32, 256>}, {pipeline_mode = #tpu.pipeline_mode<synchronous>, transform_indices = @transform_1, window_bounds = array<i64: 256, 128>}, {pipeline_mode = #tpu.pipeline_mode<synchronous>, transform_indices = @transform_2, window_bounds = array<i64: 128, 128>}, {pipeline_mode = #tpu.pipeline_mode<synchronous>, transform_indices = @transform_3, window_bounds = array<i64: 128, 128>}, {pipeline_mode = #tpu.pipeline_mode<synchronous>, transform_indices = @transform_4, window_bounds = array<i64: 4, 128>}, {transform_indices = @transform_5, window_bounds = array<i64: 32, 128>}]} {
    %c0 = arith.constant 0 : index
    %c0_0 = arith.constant 0 : index
    %0 = vector.load %arg5[%c0, %c0_0] : memref<4x128xf32, #tpu.memory_space<vmem>>, vector<4x128xf32>
    %c0_1 = arith.constant 0 : index
    %c0_2 = arith.constant 0 : index
    %1 = vector.load %arg1[%c0_1, %c0_2] : memref<32x256xbf16, #tpu.memory_space<vmem>>, vector<32x256xbf16>
    %c0_3 = arith.constant 0 : index
    %c0_4 = arith.constant 0 : index
    %2 = vector.load %arg2[%c0_3, %c0_4] : memref<256x128xbf16, #tpu.memory_space<vmem>>, vector<256x128xbf16>
    %cst = arith.constant dense<0.000000e+00> : vector<32x128xf32>
    %3 = tpu.matmul %1, %2, %cst {dimension_numbers = #tpu.dot_dimension_numbers<[1], [0], [0], [1], [0, 0, 1, 1], [], []>} : vector<32x256xbf16>, vector<256x128xbf16>, vector<32x128xf32> -> vector<32x128xf32>
    %4 = vector.extract_strided_slice %0 {offsets = [0, 0], sizes = [1, 128], strides = [1, 1]} : vector<4x128xf32> to vector<1x128xf32>
    %5 = vector.broadcast %4 : vector<1x128xf32> to vector<32x128xf32>
    %6 = arith.addf %3, %5 : vector<32x128xf32>
    %cst_5 = arith.constant 0.000000e+00 : f32
    %7 = vector.broadcast %cst_5 : f32 to vector<32x128xf32>
    %8 = arith.maximumf %6, %7 : vector<32x128xf32>
    %9 = arith.truncf %8 : vector<32x128xf32> to vector<32x128xbf16>
    %c0_6 = arith.constant 0 : index
    %c0_7 = arith.constant 0 : index
    %10 = vector.load %arg3[%c0_6, %c0_7] : memref<128x128xbf16, #tpu.memory_space<vmem>>, vector<128x128xbf16>
    %cst_8 = arith.constant dense<0.000000e+00> : vector<32x128xf32>
    %11 = tpu.matmul %9, %10, %cst_8 {dimension_numbers = #tpu.dot_dimension_numbers<[1], [0], [0], [1], [0, 0, 1, 1], [], []>} : vector<32x128xbf16>, vector<128x128xbf16>, vector<32x128xf32> -> vector<32x128xf32>
    %12 = vector.extract_strided_slice %0 {offsets = [1, 0], sizes = [1, 128], strides = [1, 1]} : vector<4x128xf32> to vector<1x128xf32>
    %13 = vector.broadcast %12 : vector<1x128xf32> to vector<32x128xf32>
    %14 = arith.addf %11, %13 : vector<32x128xf32>
    %cst_9 = arith.constant 0.000000e+00 : f32
    %15 = vector.broadcast %cst_9 : f32 to vector<32x128xf32>
    %16 = arith.maximumf %14, %15 : vector<32x128xf32>
    %17 = arith.truncf %16 : vector<32x128xf32> to vector<32x128xbf16>
    %c0_10 = arith.constant 0 : index
    %c0_11 = arith.constant 0 : index
    %18 = vector.load %arg4[%c0_10, %c0_11] : memref<128x128xbf16, #tpu.memory_space<vmem>>, vector<128x128xbf16>
    %cst_12 = arith.constant dense<0.000000e+00> : vector<32x128xf32>
    %19 = tpu.matmul %17, %18, %cst_12 {dimension_numbers = #tpu.dot_dimension_numbers<[1], [0], [0], [1], [0, 0, 1, 1], [], []>} : vector<32x128xbf16>, vector<128x128xbf16>, vector<32x128xf32> -> vector<32x128xf32>
    %20 = vector.extract_strided_slice %0 {offsets = [2, 0], sizes = [1, 128], strides = [1, 1]} : vector<4x128xf32> to vector<1x128xf32>
    %21 = vector.broadcast %20 : vector<1x128xf32> to vector<32x128xf32>
    %22 = arith.addf %19, %21 : vector<32x128xf32>
    %cst_13 = arith.constant 0.000000e+00 : f32
    %23 = vector.broadcast %cst_13 : f32 to vector<32x128xf32>
    %24 = arith.maximumf %22, %23 : vector<32x128xf32>
    %25 = vector.extract_strided_slice %0 {offsets = [3, 0], sizes = [1, 128], strides = [1, 1]} : vector<4x128xf32> to vector<1x128xf32>
    %26 = vector.broadcast %25 : vector<1x128xf32> to vector<32x128xf32>
    %27 = arith.addf %24, %26 : vector<32x128xf32>
    %c0_14 = arith.constant 0 : index
    %c0_15 = arith.constant 0 : index
    %28 = vector.load %arg6[%c0_14, %c0_15] : memref<32x128xf32, #tpu.memory_space<vmem>>, vector<32x128xf32>
    tpu.vector_store %arg6[%c0_14, %c0_15], %27 {strides = array<i32>} : memref<32x128xf32, #tpu.memory_space<vmem>>, vector<32x128xf32>,
    return
  }
  func.func @transform_0(%arg0: i32) -> (i32, i32) {
    %c0_i32 = arith.constant 0 : i32
    %c0_i32_0 = arith.constant 0 : i32
    return %arg0, %c0_i32 : i32, i32
  }
  func.func @transform_1(%arg0: i32) -> (i32, i32) {
    %c0_i32 = arith.constant 0 : i32
    %c0_i32_0 = arith.constant 0 : i32
    %c0_i32_1 = arith.constant 0 : i32
    return %c0_i32, %c0_i32_0 : i32, i32
  }
  func.func @transform_2(%arg0: i32) -> (i32, i32) {
    %c0_i32 = arith.constant 0 : i32
    %c0_i32_0 = arith.constant 0 : i32
    %c0_i32_1 = arith.constant 0 : i32
    return %c0_i32, %c0_i32_0 : i32, i32
  }
  func.func @transform_3(%arg0: i32) -> (i32, i32) {
    %c0_i32 = arith.constant 0 : i32
    %c0_i32_0 = arith.constant 0 : i32
    %c0_i32_1 = arith.constant 0 : i32
    return %c0_i32, %c0_i32_0 : i32, i32
  }
  func.func @transform_4(%arg0: i32) -> (i32, i32) {
    %c0_i32 = arith.constant 0 : i32
    %c0_i32_0 = arith.constant 0 : i32
    %c0_i32_1 = arith.constant 0 : i32
    return %c0_i32, %c0_i32_0 : i32, i32
  }
  func.func @transform_5(%arg0: i32) -> (i32, i32) {
    %c0_i32 = arith.constant 0 : i32
    %c0_i32_0 = arith.constant 0 : i32
    return %arg0, %c0_i32 : i32, i32
  }
}

</mosaic_0001>

<llo_original>
// kernel: goal_state_forward.3
$region0: #{goal_state_forward.3}
  #allocation0 [shape = 'u32[]', space=smem, size = 0x4, offset = 0x4, fixed_abs, tag = 'smem constant byte address 0x4 - core index']
  #allocation1 [shape = 'u32[144,128]{1,0:T(1,128)}', space=vmem, size = 0x12000, scoped, tag = 'internal scratch']
  %s0 = inlined_call_operand.vmem [shape: bf16[16,256], index: 0, kind: input, shape index: {}]
  %s1 = inlined_call_operand.hbm [shape: bf16[256,128], index: 1, kind: input, shape index: {}]
  %s2 = inlined_call_operand.vmem [shape: bf16[128,128], index: 2, kind: input, shape index: {}]
  %s3 = inlined_call_operand.hbm [shape: bf16[128,128], index: 3, kind: input, shape index: {}]
  %s4 = inlined_call_operand.vmem [shape: f32[4,128], index: 4, kind: input, shape index: {}]
  %s5 = inlined_call_operand.vmem [shape: bf16[16,128], index: 5, kind: output, shape index: {}]
  %s6 = sld [smem:[#allocation0]]
  $region38: #{goal_state_forward.3} parent=0
    _
  %s8 = ssub.s32 1, %s6
  %s9 = scalar_select 0, %s8, %s6
  $region1: #{goal_state_forward.3} parent=0
    #allocation2 [shape = 'u8[65536]{0}', space=vmem, size = 0x10000, scoped, tag = 'input window, operand 1, single buffered']
    #allocation3 [shape = 's32[1]{0}', space=sflag, size = 0x4, scoped, tag = 'scoped memory for goal_state_forward.3']
    #allocation4 [shape = 'u8[32768]{0}', space=vmem, size = 0x8000, scoped, tag = 'input window, operand 3, single buffered']
    #allocation5 [shape = 's32[1]{0}', space=sflag, size = 0x4, scoped, tag = 'scoped memory for goal_state_forward.3']
    %10 = vsyncpa [#allocation3], 0
    %11 = vsyncpa [#allocation5], 0
    // Predicated region
    $region2: #{goal_state_forward.3} parent=1 // pred_check
      _
    $region3: #{goal_state_forward.3} parent=1 // pred_check_branch
      %13 = sbr.rel (0) target = $region5
    $region4: #{goal_state_forward.3} parent=1 // pred_region
      _
    $region5: #{goal_state_forward.3} parent=1 // pred_fallthru
      _
    // Predicated region
    $region6: #{goal_state_forward.3} parent=1 // pred_check
      _
    $region7: #{goal_state_forward.3} parent=1 // pred_check_branch
      %15 = sbr.rel (0) target = $region9
    $region8: #{goal_state_forward.3} parent=1 // pred_region
      %s17 = ssub.s32 2048, 2048
      %18 = vsyncadd [#allocation3], %s17
      %s19 = sshll.u32 [#allocation2], 4
      %s20 = int_to_ptr.vmem [resolvable:$true] %s19
      %25 = dma.hbm_to_vmem [thread:$0]  %s1, 2048, %s20, [#allocation3], 64, 64, 4
    $region9: #{goal_state_forward.3} parent=1 // pred_fallthru
      _
    // Predicated region
    $region10: #{goal_state_forward.3} parent=1 // pred_check
      _
    $region11: #{goal_state_forward.3} parent=1 // pred_check_branch
      %27 = sbr.rel (0) target = $region13
    $region12: #{goal_state_forward.3} parent=1 // pred_region
      _
    $region13: #{goal_state_forward.3} parent=1 // pred_fallthru
      _
    // Predicated region
    $region14: #{goal_state_forward.3} parent=1 // pred_check
      _
    $region15: #{goal_state_forward.3} parent=1 // pred_check_branch
      %29 = sbr.rel (0) target = $region17
    $region16: #{goal_state_forward.3} parent=1 // pred_region
      %s31 = ssub.s32 1024, 1024
      %32 = vsyncadd [#allocation5], %s31
      %s33 = sshll.u32 [#allocation4], 4
      %s34 = int_to_ptr.vmem [resolvable:$true] %s33
      %39 = dma.hbm_to_vmem [thread:$0]  %s3, 1024, %s34, [#allocation5], 64, 64, 4
    $region17: #{goal_state_forward.3} parent=1 // pred_fallthru
      _
    // Predicated region
    $region18: #{goal_state_forward.3} parent=1 // pred_check
      _
    $region19: #{goal_state_forward.3} parent=1 // pred_check_branch
      %41 = sbr.rel (0) target = $region21
    $region20: #{goal_state_forward.3} parent=1 // pred_region
      _
    $region21: #{goal_state_forward.3} parent=1 // pred_fallthru
      _
    // Predicated region
    $region22: #{goal_state_forward.3} parent=1 // pred_check
      _
    $region23: #{goal_state_forward.3} parent=1 // pred_check_branch
      %43 = sbr.rel (0) target = $region25
    $region24: #{goal_state_forward.3} parent=1 // pred_region
      %44 = dma.done [#allocation3], 2048
    $region25: #{goal_state_forward.3} parent=1 // pred_fallthru
      _
    // Predicated region
    $region26: #{goal_state_forward.3} parent=1 // pred_check
      _
    $region27: #{goal_state_forward.3} parent=1 // pred_check_branch
      %46 = sbr.rel (0) target = $region29
    $region28: #{goal_state_forward.3} parent=1 // pred_region
      %47 = dma.done [#allocation5], 1024
    $region29: #{goal_state_forward.3} parent=1 // pred_fallthru
      _
    %v49 = vld [vmem:[%s4] sm:$0xf]
    %v50 = vld [vmem:[%s0] sm:$0xff]
    %v51 = vld [vmem:[%s0 + $0x8] sm:$0xff]
    %v52 = vld [vmem:[#allocation2] sm:$0xf]
    %v53 = vld [vmem:[#allocation2 + $0x4] sm:$0xf]
    %v54 = vld [vmem:[#allocation2 + $0x8] sm:$0xf]
    %v55 = vld [vmem:[#allocation2 + $0xc] sm:$0xf]
    %v56 = vld [vmem:[#allocation2 + $0x10] sm:$0xf]
    %v57 = vld [vmem:[#allocation2 + $0x14] sm:$0xf]
    %v58 = vld [vmem:[#allocation2 + $0x18] sm:$0xf]
    %v59 = vld [vmem:[#allocation2 + $0x1c] sm:$0xf]
    %v60 = vld [vmem:[#allocation2 + $0x20] sm:$0xf]
    %v61 = vld [vmem:[#allocation2 + $0x24] sm:$0xf]
    %v62 = vld [vmem:[#allocation2 + $0x28] sm:$0xf]
    %v63 = vld [vmem:[#allocation2 + $0x2c] sm:$0xf]
    %v64 = vld [vmem:[#allocation2 + $0x30] sm:$0xf]
    %v65 = vld [vmem:[#allocation2 + $0x34] sm:$0xf]
    %v66 = vld [vmem:[#allocation2 + $0x38] sm:$0xf]
    %v67 = vld [vmem:[#allocation2 + $0x3c] sm:$0xf]
    %v68 = vld [vmem:[#allocation2 + $0x40] sm:$0xf]
    %v69 = vld [vmem:[#allocation2 + $0x44] sm:$0xf]
    %v70 = vld [vmem:[#allocation2 + $0x48] sm:$0xf]
    %v71 = vld [vmem:[#allocation2 + $0x4c] sm:$0xf]
    %v72 = vld [vmem:[#allocation2 + $0x50] sm:$0xf]
    %v73 = vld [vmem:[#allocation2 + $0x54] sm:$0xf]
    %v74 = vld [vmem:[#allocation2 + $0x58] sm:$0xf]
    %v75 = vld [vmem:[#allocation2 + $0x5c] sm:$0xf]
    %v76 = vld [vmem:[#allocation2 + $0x60] sm:$0xf]
    %v77 = vld [vmem:[#allocation2 + $0x64] sm:$0xf]
    %v78 = vld [vmem:[#allocation2 + $0x68] sm:$0xf]
    %v79 = vld [vmem:[#allocation2 + $0x6c] sm:$0xf]
    %v80 = vld [vmem:[#allocation2 + $0x70] sm:$0xf]
    %v81 = vld [vmem:[#allocation2 + $0x74] sm:$0xf]
    %v82 = vld [vmem:[#allocation2 + $0x78] sm:$0xf]
    %v83 = vld [vmem:[#allocation2 + $0x7c] sm:$0xf]
    %v84 = vlaneseq
    %v85 = vshrl.u32 %v84, 7
    %v86 = vsub.s32 0, %v85
    %v87 = vrot.slane %v49, %v86
    %v90 = vunpack.c.l.b16 %v50
    %v91 = vunpack.c.h.b16 %v50
    %v92 = vunpack.c.l.b16 %v51
    %v93 = vunpack.c.h.b16 %v51
    %v94 = vpack.c.b16 %v92, %v90
    %v95 = vpack.c.b16 %v93, %v91
    %v130 = vunpack.c.l.b16 %v52
    %v131 = vunpack.c.l.b16 %v53
    %v132 = vunpack.c.l.b16 %v54
    %v133 = vunpack.c.l.b16 %v55
    %v134 = vunpack.c.l.b16 %v56
    %v135 = vunpack.c.l.b16 %v57
    %v136 = vunpack.c.l.b16 %v58
    %v137 = vunpack.c.l.b16 %v59
    %v138 = vunpack.c.l.b16 %v60
    %v139 = vunpack.c.l.b16 %v61
    %v140 = vunpack.c.l.b16 %v62
    %v141 = vunpack.c.l.b16 %v63
    %v142 = vunpack.c.l.b16 %v64
    %v143 = vunpack.c.l.b16 %v65
    %v144 = vunpack.c.l.b16 %v66
    %v145 = vunpack.c.l.b16 %v67
    %v146 = vunpack.c.l.b16 %v68
    %v147 = vunpack.c.l.b16 %v69
    %v148 = vunpack.c.l.b16 %v70
    %v149 = vunpack.c.l.b16 %v71
    %v150 = vunpack.c.l.b16 %v72
    %v151 = vunpack.c.l.b16 %v73
    %v152 = vunpack.c.l.b16 %v74
    %v153 = vunpack.c.l.b16 %v75
    %v154 = vunpack.c.l.b16 %v76
    %v155 = vunpack.c.l.b16 %v77
    %v156 = vunpack.c.l.b16 %v78
    %v157 = vunpack.c.l.b16 %v79
    %v158 = vunpack.c.l.b16 %v80
    %v159 = vunpack.c.l.b16 %v81
    %v160 = vunpack.c.l.b16 %v82
    %v161 = vunpack.c.l.b16 %v83
    %v162 = vpack.c.b16 %v131, %v130
    %v163 = vpack.c.b16 %v133, %v132
    %v164 = vpack.c.b16 %v135, %v134
    %v165 = vpack.c.b16 %v137, %v136
    %v166 = vpack.c.b16 %v139, %v138
    %v167 = vpack.c.b16 %v141, %v140
    %v168 = vpack.c.b16 %v143, %v142
    %v169 = vpack.c.b16 %v145, %v144
    %v170 = vpack.c.b16 %v147, %v146
    %v171 = vpack.c.b16 %v149, %v148
    %v172 = vpack.c.b16 %v151, %v150
    %v173 = vpack.c.b16 %v153, %v152
    %v174 = vpack.c.b16 %v155, %v154
    %v175 = vpack.c.b16 %v157, %v156
    %v176 = vpack.c.b16 %v159, %v158
    %v177 = vpack.c.b16 %v161, %v160
    %194 = vmatprep.subr.bf16.mxu0 0
    %195 = vmatpush1.bf16.msra.mxu0 %v162
    %196 = vmatprep.subr.bf16.mxu0 0
    %197 = vmatpush1.bf16.msra.mxu0 %v163
    %198 = vmatprep.subr.bf16.mxu0 0
    %199 = vmatpush1.bf16.msra.mxu0 %v164
    %200 = vmatprep.subr.bf16.mxu0 0
    %201 = vmatpush1.bf16.msra.mxu0 %v165
    %202 = vmatprep.subr.bf16.mxu0 0
    %203 = vmatpush1.bf16.msra.mxu0 %v166
    %204 = vmatprep.subr.bf16.mxu0 0
    %205 = vmatpush1.bf16.msra.mxu0 %v167
    %206 = vmatprep.subr.bf16.mxu0 0
    %207 = vmatpush1.bf16.msra.mxu0 %v168
    %208 = vmatprep.subr.bf16.mxu0 0
    %209 = vmatpush1.bf16.msra.mxu0 %v169
    %210 = vmatprep.subr.bf16.mxu0 0
    %211 = vmatpush1.bf16.msra.mxu0 %v170
    %212 = vmatprep.subr.bf16.mxu0 0
    %213 = vmatpush1.bf16.msra.mxu0 %v171
    %214 = vmatprep.subr.bf16.mxu0 0
    %215 = vmatpush1.bf16.msra.mxu0 %v172
    %216 = vmatprep.subr.bf16.mxu0 0
    %217 = vmatpush1.bf16.msra.mxu0 %v173
    %218 = vmatprep.subr.bf16.mxu0 0
    %219 = vmatpush1.bf16.msra.mxu0 %v174
    %220 = vmatprep.subr.bf16.mxu0 0
    %221 = vmatpush1.bf16.msra.mxu0 %v175
    %222 = vmatprep.subr.bf16.mxu0 0
    %223 = vmatpush1.bf16.msra.mxu0 %v176
    %224 = vmatprep.subr.bf16.mxu0 0
    %225 = vmatpush1.bf16.msra.mxu0 %v177
    %226 = vmatprep.mubr.bf16.mxu0 %v95
    %227 = vmatmul.mubr.bf16.gmra.mrb[0].mxu0 %v94
    %v228 = vpop.f32.mrb[0].mxu0
    %v229 = vadd.f32 %v87, %v228
    %v230 = vpop.f32.mrb[0].mxu0
    %v231 = vpop.f32.mrb[0].mxu0
    %v232 = vadd.f32 %v87, %v231
    %v233 = vpop.f32.mrb[0].mxu0
    %234 = vdwg.mxu0
    %v235 = vmax.f32 %v229, 0.0
    %v236 = vmax.f32 %v232, 0.0
    %v237 = vpack.c.bf16 %v236, %v235
    %v238 = vld [vmem:[%s2] sm:$0xf]
    %v239 = vld [vmem:[%s2 + $0x4] sm:$0xf]
    %v240 = vld [vmem:[%s2 + $0x8] sm:$0xf]
    %v241 = vld [vmem:[%s2 + $0xc] sm:$0xf]
    %v242 = vld [vmem:[%s2 + $0x10] sm:$0xf]
    %v243 = vld [vmem:[%s2 + $0x14] sm:$0xf]
    %v244 = vld [vmem:[%s2 + $0x18] sm:$0xf]
    %v245 = vld [vmem:[%s2 + $0x1c] sm:$0xf]
    %v246 = vld [vmem:[%s2 + $0x20] sm:$0xf]
    %v247 = vld [vmem:[%s2 + $0x24] sm:$0xf]
    %v248 = vld [vmem:[%s2 + $0x28] sm:$0xf]
    %v249 = vld [vmem:[%s2 + $0x2c] sm:$0xf]
    %v250 = vld [vmem:[%s2 + $0x30] sm:$0xf]
    %v251 = vld [vmem:[%s2 + $0x34] sm:$0xf]
    %v252 = vld [vmem:[%s2 + $0x38] sm:$0xf]
    %v253 = vld [vmem:[%s2 + $0x3c] sm:$0xf]
    %v254 = vlaneseq
    %v255 = vshrl.u32 %v254, 7
    %v256 = vsub.s32 1, %v255
    %v257 = vrot.slane %v49, %v256
    %v274 = vunpack.c.l.b16 %v238
    %v275 = vunpack.c.l.b16 %v239
    %v276 = vunpack.c.l.b16 %v240
    %v277 = vunpack.c.l.b16 %v241
    %v278 = vunpack.c.l.b16 %v242
    %v279 = vunpack.c.l.b16 %v243
    %v280 = vunpack.c.l.b16 %v244
    %v281 = vunpack.c.l.b16 %v245
    %v282 = vunpack.c.l.b16 %v246
    %v283 = vunpack.c.l.b16 %v247
    %v284 = vunpack.c.l.b16 %v248
    %v285 = vunpack.c.l.b16 %v249
    %v286 = vunpack.c.l.b16 %v250
    %v287 = vunpack.c.l.b16 %v251
    %v288 = vunpack.c.l.b16 %v252
    %v289 = vunpack.c.l.b16 %v253
    %v290 = vpack.c.b16 %v275, %v274
    %v291 = vpack.c.b16 %v277, %v276
    %v292 = vpack.c.b16 %v279, %v278
    %v293 = vpack.c.b16 %v281, %v280
    %v294 = vpack.c.b16 %v283, %v282
    %v295 = vpack.c.b16 %v285, %v284
    %v296 = vpack.c.b16 %v287, %v286
    %v297 = vpack.c.b16 %v289, %v288
    %306 = vmatprep.subr.bf16.mxu0 0
    %307 = vmatpush1.bf16.msra.mxu0 %v290
    %308 = vmatprep.subr.bf16.mxu0 0
    %309 = vmatpush1.bf16.msra.mxu0 %v291
    %310 = vmatprep.subr.bf16.mxu0 0
    %311 = vmatpush1.bf16.msra.mxu0 %v292
    %312 = vmatprep.subr.bf16.mxu0 0
    %313 = vmatpush1.bf16.msra.mxu0 %v293
    %314 = vmatprep.subr.bf16.mxu0 0
    %315 = vmatpush1.bf16.msra.mxu0 %v294
    %316 = vmatprep.subr.bf16.mxu0 0
    %317 = vmatpush1.bf16.msra.mxu0 %v295
    %318 = vmatprep.subr.bf16.mxu0 0
    %319 = vmatpush1.bf16.msra.mxu0 %v296
    %320 = vmatprep.subr.bf16.mxu0 0
    %321 = vmatpush1.bf16.msra.mxu0 %v297
    %322 = vmatprep.subr.bf16.mxu0 0
    %323 = vmatpush1.bf16.msra.mxu0 0
    %324 = vmatprep.subr.bf16.mxu0 0
    %325 = vmatpush1.bf16.msra.mxu0 0
    %326 = vmatprep.subr.bf16.mxu0 0
    %327 = vmatpush1.bf16.msra.mxu0 0
    %328 = vmatprep.subr.bf16.mxu0 0
    %329 = vmatpush1.bf16.msra.mxu0 0
    %330 = vmatprep.subr.bf16.mxu0 0
    %331 = vmatpush1.bf16.msra.mxu0 0
    %332 = vmatprep.subr.bf16.mxu0 0
    %333 = vmatpush1.bf16.msra.mxu0 0
    %334 = vmatprep.subr.bf16.mxu0 0
    %335 = vmatpush1.bf16.msra.mxu0 0
    %336 = vmatprep.subr.bf16.mxu0 0
    %337 = vmatpush1.bf16.msra.mxu0 0
    %338 = vmatprep.mubr.bf16.mxu0 0
    %339 = vmatmul.mubr.bf16.gmra.mrb[0].mxu0 %v237
    %v340 = vpop.f32.mrb[0].mxu0
    %v341 = vadd.f32 %v257, %v340
    %v342 = vpop.f32.mrb[0].mxu0
    %v343 = vpop.f32.mrb[0].mxu0
    %v344 = vadd.f32 %v257, %v343
    %v345 = vpop.f32.mrb[0].mxu0
    %346 = vdwg.mxu0
    %v347 = vmax.f32 %v341, 0.0
    %v348 = vmax.f32 %v344, 0.0
    %v349 = vpack.c.bf16 %v348, %v347
    %v350 = vld [vmem:[#allocation4] sm:$0xf]
    %v351 = vld [vmem:[#allocation4 + $0x4] sm:$0xf]
    %v352 = vld [vmem:[#allocation4 + $0x8] sm:$0xf]
    %v353 = vld [vmem:[#allocation4 + $0xc] sm:$0xf]
    %v354 = vld [vmem:[#allocation4 + $0x10] sm:$0xf]
    %v355 = vld [vmem:[#allocation4 + $0x14] sm:$0xf]
    %v356 = vld [vmem:[#allocation4 + $0x18] sm:$0xf]
    %v357 = vld [vmem:[#allocation4 + $0x1c] sm:$0xf]
    %v358 = vld [vmem:[#allocation4 + $0x20] sm:$0xf]
    %v359 = vld [vmem:[#allocation4 + $0x24] sm:$0xf]
    %v360 = vld [vmem:[#allocation4 + $0x28] sm:$0xf]
    %v361 = vld [vmem:[#allocation4 + $0x2c] sm:$0xf]
    %v362 = vld [vmem:[#allocation4 + $0x30] sm:$0xf]
    %v363 = vld [vmem:[#allocation4 + $0x34] sm:$0xf]
    %v364 = vld [vmem:[#allocation4 + $0x38] sm:$0xf]
    %v365 = vld [vmem:[#allocation4 + $0x3c] sm:$0xf]
    %v366 = vlaneseq
    %v367 = vshrl.u32 %v366, 7
    %v368 = vsub.s32 2, %v367
    %v369 = vrot.slane %v49, %v368
    %v386 = vunpack.c.l.b16 %v350
    %v387 = vunpack.c.l.b16 %v351
    %v388 = vunpack.c.l.b16 %v352
    %v389 = vunpack.c.l.b16 %v353
    %v390 = vunpack.c.l.b16 %v354
    %v391 = vunpack.c.l.b16 %v355
    %v392 = vunpack.c.l.b16 %v356
    %v393 = vunpack.c.l.b16 %v357
    %v394 = vunpack.c.l.b16 %v358
    %v395 = vunpack.c.l.b16 %v359
    %v396 = vunpack.c.l.b16 %v360
    %v397 = vunpack.c.l.b16 %v361
    %v398 = vunpack.c.l.b16 %v362
    %v399 = vunpack.c.l.b16 %v363
    %v400 = vunpack.c.l.b16 %v364
    %v401 = vunpack.c.l.b16 %v365
    %v402 = vpack.c.b16 %v387, %v386
    %v403 = vpack.c.b16 %v389, %v388
    %v404 = vpack.c.b16 %v391, %v390
    %v405 = vpack.c.b16 %v393, %v392
    %v406 = vpack.c.b16 %v395, %v394
    %v407 = vpack.c.b16 %v397, %v396
    %v408 = vpack.c.b16 %v399, %v398
    %v409 = vpack.c.b16 %v401, %v400
    %418 = vmatprep.subr.bf16.mxu0 0
    %419 = vmatpush1.bf16.msra.mxu0 %v402
    %420 = vmatprep.subr.bf16.mxu0 0
    %421 = vmatpush1.bf16.msra.mxu0 %v403
    %422 = vmatprep.subr.bf16.mxu0 0
    %423 = vmatpush1.bf16.msra.mxu0 %v404
    %424 = vmatprep.subr.bf16.mxu0 0
    %425 = vmatpush1.bf16.msra.mxu0 %v405
    %426 = vmatprep.subr.bf16.mxu0 0
    %427 = vmatpush1.bf16.msra.mxu0 %v406
    %428 = vmatprep.subr.bf16.mxu0 0
    %429 = vmatpush1.bf16.msra.mxu0 %v407
    %430 = vmatprep.subr.bf16.mxu0 0
    %431 = vmatpush1.bf16.msra.mxu0 %v408
    %432 = vmatprep.subr.bf16.mxu0 0
    %433 = vmatpush1.bf16.msra.mxu0 %v409
    %434 = vmatprep.subr.bf16.mxu0 0
    %435 = vmatpush1.bf16.msra.mxu0 0
    %436 = vmatprep.subr.bf16.mxu0 0
    %437 = vmatpush1.bf16.msra.mxu0 0
    %438 = vmatprep.subr.bf16.mxu0 0
    %439 = vmatpush1.bf16.msra.mxu0 0
    %440 = vmatprep.subr.bf16.mxu0 0
    %441 = vmatpush1.bf16.msra.mxu0 0
    %442 = vmatprep.subr.bf16.mxu0 0
    %443 = vmatpush1.bf16.msra.mxu0 0
    %444 = vmatprep.subr.bf16.mxu0 0
    %445 = vmatpush1.bf16.msra.mxu0 0
    %446 = vmatprep.subr.bf16.mxu0 0
    %447 = vmatpush1.bf16.msra.mxu0 0
    %448 = vmatprep.subr.bf16.mxu0 0
    %449 = vmatpush1.bf16.msra.mxu0 0
    %450 = vmatprep.mubr.bf16.mxu0 0
    %451 = vmatmul.mubr.bf16.gmra.mrb[0].mxu0 %v349
    %v452 = vpop.f32.mrb[0].mxu0
    %v453 = vadd.f32 %v369, %v452
    %v454 = vpop.f32.mrb[0].mxu0
    %v455 = vpop.f32.mrb[0].mxu0
    %v456 = vadd.f32 %v369, %v455
    %v457 = vpop.f32.mrb[0].mxu0
    %458 = vdwg.mxu0
    %v459 = vmax.f32 %v453, 0.0
    %v460 = vmax.f32 %v456, 0.0
    %v461 = vlaneseq
    %v462 = vshrl.u32 %v461, 7
    %v463 = vsub.s32 3, %v462
    %v464 = vrot.slane %v49, %v463
    %v465 = vadd.f32 %v459, %v464
    %v466 = vadd.f32 %v460, %v464
    %v467 = vpack.c.bf16 %v466, %v465
    %v469 = vunpack.c.l.b16 %v467
    %v470 = vunpack.c.h.b16 %v467
    %v471 = vpack.c.b16 %v469, %v469
    %v472 = vpack.c.b16 %v470, %v470
    %475 = vst [vmem:[%s5] sm:$0xf] %v471
    %476 = vst [vmem:[%s5 + $0x4] sm:$0xf] %v472
    // Predicated region
    $region30: #{goal_state_forward.3} parent=1 // pred_check
      _
    $region31: #{goal_state_forward.3} parent=1 // pred_check_branch
      %478 = sbr.rel (0) target = $region33
    $region32: #{goal_state_forward.3} parent=1 // pred_region
      _
    $region33: #{goal_state_forward.3} parent=1 // pred_fallthru
      _
    // Predicated region
    $region34: #{goal_state_forward.3} parent=1 // pred_check
      _
    $region35: #{goal_state_forward.3} parent=1 // pred_check_branch
      %480 = sbr.rel (0) target = $region37
    $region36: #{goal_state_forward.3} parent=1 // pred_region
      _
    $region37: #{goal_state_forward.3} parent=1 // pred_fallthru
      _
    %481 = vsyncpa [#allocation3], 1
    %482 = vsyncpa [#allocation5], 1

// kernel: goal_state_forward.4
$region0: #{goal_state_forward.4}
  #allocation0 [shape = 'u32[]', space=smem, size = 0x4, offset = 0x4, fixed_abs, tag = 'smem constant byte address 0x4 - core index']
  #allocation1 [shape = 'u32[144,128]{1,0:T(1,128)}', space=vmem, size = 0x12000, scoped, tag = 'internal scratch']
  %s0 = inlined_call_operand.vmem [shape: bf16[16,1024], index: 0, kind: input, shape index: {}]
  %s1 = inlined_call_operand.hbm [shape: bf16[1024,128], index: 1, kind: input, shape index: {}]
  %s2 = inlined_call_operand.vmem [shape: f32[1,128], index: 2, kind: input, shape index: {}]
  %s3 = inlined_call_operand.vmem [shape: f32[16,128], index: 3, kind: output, shape index: {}]
  %s4 = sld [smem:[#allocation0]]
  $region26: #{goal_state_forward.4} parent=0
    _
  %s6 = ssub.s32 1, %s4
  %s7 = scalar_select 0, %s6, %s4
  $region1: #{goal_state_forward.4} parent=0
    #allocation2 [shape = 'u8[262144]{0}', space=vmem, size = 0x40000, scoped, tag = 'input window, operand 1, single buffered']
    #allocation3 [shape = 's32[1]{0}', space=sflag, size = 0x4, scoped, tag = 'scoped memory for goal_state_forward.4']
    %8 = vsyncpa [#allocation3], 0
    // Predicated region
    $region2: #{goal_state_forward.4} parent=1 // pred_check
      _
    $region3: #{goal_state_forward.4} parent=1 // pred_check_branch
      %10 = sbr.rel (0) target = $region5
    $region4: #{goal_state_forward.4} parent=1 // pred_region
      _
    $region5: #{goal_state_forward.4} parent=1 // pred_fallthru
      _
    // Predicated region
    $region6: #{goal_state_forward.4} parent=1 // pred_check
      _
    $region7: #{goal_state_forward.4} parent=1 // pred_check_branch
      %12 = sbr.rel (0) target = $region9
    $region8: #{goal_state_forward.4} parent=1 // pred_region
      %s14 = ssub.s32 8192, 8192
      %15 = vsyncadd [#allocation3], %s14
      %s16 = sshll.u32 [#allocation2], 4
      %s17 = int_to_ptr.vmem [resolvable:$true] %s16
      %22 = dma.hbm_to_vmem [thread:$0]  %s1, 8192, %s17, [#allocation3], 64, 64, 4
    $region9: #{goal_state_forward.4} parent=1 // pred_fallthru
      _
    // Predicated region
    $region10: #{goal_state_forward.4} parent=1 // pred_check
      _
    $region11: #{goal_state_forward.4} parent=1 // pred_check_branch
      %24 = sbr.rel (0) target = $region13
    $region12: #{goal_state_forward.4} parent=1 // pred_region
      _
    $region13: #{goal_state_forward.4} parent=1 // pred_fallthru
      _
    // Predicated region
    $region14: #{goal_state_forward.4} parent=1 // pred_check
      _
    $region15: #{goal_state_forward.4} parent=1 // pred_check_branch
      %26 = sbr.rel (0) target = $region17
    $region16: #{goal_state_forward.4} parent=1 // pred_region
      %27 = dma.done [#allocation3], 8192
    $region17: #{goal_state_forward.4} parent=1 // pred_fallthru
      _
    %v29 = vld [vmem:[%s0] sm:$0xff]
    %v30 = vld [vmem:[%s0 + $0x8] sm:$0xff]
    %v31 = vld [vmem:[%s0 + $0x10] sm:$0xff]
    %v32 = vld [vmem:[%s0 + $0x18] sm:$0xff]
    %v33 = vld [vmem:[%s0 + $0x20] sm:$0xff]
    %v34 = vld [vmem:[%s0 + $0x28] sm:$0xff]
    %v35 = vld [vmem:[%s0 + $0x30] sm:$0xff]
    %v36 = vld [vmem:[%s0 + $0x38] sm:$0xff]
    %v37 = vld [vmem:[#allocation2] sm:$0xf]
    %v38 = vld [vmem:[#allocation2 + $0x4] sm:$0xf]
    %v39 = vld [vmem:[#allocation2 + $0x8] sm:$0xf]
    %v40 = vld [vmem:[#allocation2 + $0xc] sm:$0xf]
    %v41 = vld [vmem:[#allocation2 + $0x10] sm:$0xf]
    %v42 = vld [vmem:[#allocation2 + $0x14] sm:$0xf]
    %v43 = vld [vmem:[#allocation2 + $0x18] sm:$0xf]
    %v44 = vld [vmem:[#allocation2 + $0x1c] sm:$0xf]
    %v45 = vld [vmem:[#allocation2 + $0x20] sm:$0xf]
    %v46 = vld [vmem:[#allocation2 + $0x24] sm:$0xf]
    %v47 = vld [vmem:[#allocation2 + $0x28] sm:$0xf]
    %v48 = vld [vmem:[#allocation2 + $0x2c] sm:$0xf]
    %v49 = vld [vmem:[#allocation2 + $0x30] sm:$0xf]
    %v50 = vld [vmem:[#allocation2 + $0x34] sm:$0xf]
    %v51 = vld [vmem:[#allocation2 + $0x38] sm:$0xf]
    %v52 = vld [vmem:[#allocation2 + $0x3c] sm:$0xf]
    %v53 = vld [vmem:[#allocation2 + $0x40] sm:$0xf]
    %v54 = vld [vmem:[#allocation2 + $0x44] sm:$0xf]
    %v55 = vld [vmem:[#allocation2 + $0x48] sm:$0xf]
    %v56 = vld [vmem:[#allocation2 + $0x4c] sm:$0xf]
    %v57 = vld [vmem:[#allocation2 + $0x50] sm:$0xf]
    %v58 = vld [vmem:[#allocation2 + $0x54] sm:$0xf]
    %v59 = vld [vmem:[#allocation2 + $0x58] sm:$0xf]
    %v60 = vld [vmem:[#allocation2 + $0x5c] sm:$0xf]
    %v61 = vld [vmem:[#allocation2 + $0x60] sm:$0xf]
    %v62 = vld [vmem:[#allocation2 + $0x64] sm:$0xf]
    %v63 = vld [vmem:[#allocation2 + $0x68] sm:$0xf]
    %v64 = vld [vmem:[#allocation2 + $0x6c] sm:$0xf]
    %v65 = vld [vmem:[#allocation2 + $0x70] sm:$0xf]
    %v66 = vld [vmem:[#allocation2 + $0x74] sm:$0xf]
    %v67 = vld [vmem:[#allocation2 + $0x78] sm:$0xf]
    %v68 = vld [vmem:[#allocation2 + $0x7c] sm:$0xf]
    %v69 = vld [vmem:[#allocation2 + $0x80] sm:$0xf]
    %v70 = vld [vmem:[#allocation2 + $0x84] sm:$0xf]
    %v71 = vld [vmem:[#allocation2 + $0x88] sm:$0xf]
    %v72 = vld [vmem:[#allocation2 + $0x8c] sm:$0xf]
    %v73 = vld [vmem:[#allocation2 + $0x90] sm:$0xf]
    %v74 = vld [vmem:[#allocation2 + $0x94] sm:$0xf]
    %v75 = vld [vmem:[#allocation2 + $0x98] sm:$0xf]
    %v76 = vld [vmem:[#allocation2 + $0x9c] sm:$0xf]
    %v77 = vld [vmem:[#allocation2 + $0xa0] sm:$0xf]
    %v78 = vld [vmem:[#allocation2 + $0xa4] sm:$0xf]
    %v79 = vld [vmem:[#allocation2 + $0xa8] sm:$0xf]
    %v80 = vld [vmem:[#allocation2 + $0xac] sm:$0xf]
    %v81 = vld [vmem:[#allocation2 + $0xb0] sm:$0xf]
    %v82 = vld [vmem:[#allocation2 + $0xb4] sm:$0xf]
    %v83 = vld [vmem:[#allocation2 + $0xb8] sm:$0xf]
    %v84 = vld [vmem:[#allocation2 + $0xbc] sm:$0xf]
    %v85 = vld [vmem:[#allocation2 + $0xc0] sm:$0xf]
    %v86 = vld [vmem:[#allocation2 + $0xc4] sm:$0xf]
    %v87 = vld [vmem:[#allocation2 + $0xc8] sm:$0xf]
    %v88 = vld [vmem:[#allocation2 + $0xcc] sm:$0xf]
    %v89 = vld [vmem:[#allocation2 + $0xd0] sm:$0xf]
    %v90 = vld [vmem:[#allocation2 + $0xd4] sm:$0xf]
    %v91 = vld [vmem:[#allocation2 + $0xd8] sm:$0xf]
    %v92 = vld [vmem:[#allocation2 + $0xdc] sm:$0xf]
    %v93 = vld [vmem:[#allocation2 + $0xe0] sm:$0xf]
    %v94 = vld [vmem:[#allocation2 + $0xe4] sm:$0xf]
    %v95 = vld [vmem:[#allocation2 + $0xe8] sm:$0xf]
    %v96 = vld [vmem:[#allocation2 + $0xec] sm:$0xf]
    %v97 = vld [vmem:[#allocation2 + $0xf0] sm:$0xf]
    %v98 = vld [vmem:[#allocation2 + $0xf4] sm:$0xf]
    %v99 = vld [vmem:[#allocation2 + $0xf8] sm:$0xf]
    %v100 = vld [vmem:[#allocation2 + $0xfc] sm:$0xf]
    %v101 = vld [vmem:[#allocation2 + $0x100] sm:$0xf]
    %v102 = vld [vmem:[#allocation2 + $0x104] sm:$0xf]
    %v103 = vld [vmem:[#allocation2 + $0x108] sm:$0xf]
    %v104 = vld [vmem:[#allocation2 + $0x10c] sm:$0xf]
    %v105 = vld [vmem:[#allocation2 + $0x110] sm:$0xf]
    %v106 = vld [vmem:[#allocation2 + $0x114] sm:$0xf]
    %v107 = vld [vmem:[#allocation2 + $0x118] sm:$0xf]
    %v108 = vld [vmem:[#allocation2 + $0x11c] sm:$0xf]
    %v109 = vld [vmem:[#allocation2 + $0x120] sm:$0xf]
    %v110 = vld [vmem:[#allocation2 + $0x124] sm:$0xf]
    %v111 = vld [vmem:[#allocation2 + $0x128] sm:$0xf]
    %v112 = vld [vmem:[#allocation2 + $0x12c] sm:$0xf]
    %v113 = vld [vmem:[#allocation2 + $0x130] sm:$0xf]
    %v114 = vld [vmem:[#allocation2 + $0x134] sm:$0xf]
    %v115 = vld [vmem:[#allocation2 + $0x138] sm:$0xf]
    %v116 = vld [vmem:[#allocation2 + $0x13c] sm:$0xf]
    %v117 = vld [vmem:[#allocation2 + $0x140] sm:$0xf]
    %v118 = vld [vmem:[#allocation2 + $0x144] sm:$0xf]
    %v119 = vld [vmem:[#allocation2 + $0x148] sm:$0xf]
    %v120 = vld [vmem:[#allocation2 + $0x14c] sm:$0xf]
    %v121 = vld [vmem:[#allocation2 + $0x150] sm:$0xf]
    %v122 = vld [vmem:[#allocation2 + $0x154] sm:$0xf]
    %v123 = vld [vmem:[#allocation2 + $0x158] sm:$0xf]
    %v124 = vld [vmem:[#allocation2 + $0x15c] sm:$0xf]
    %v125 = vld [vmem:[#allocation2 + $0x160] sm:$0xf]
    %v126 = vld [vmem:[#allocation2 + $0x164] sm:$0xf]
    %v127 = vld [vmem:[#allocation2 + $0x168] sm:$0xf]
    %v128 = vld [vmem:[#allocation2 + $0x16c] sm:$0xf]
    %v129 = vld [vmem:[#allocation2 + $0x170] sm:$0xf]
    %v130 = vld [vmem:[#allocation2 + $0x174] sm:$0xf]
    %v131 = vld [vmem:[#allocation2 + $0x178] sm:$0xf]
    %v132 = vld [vmem:[#allocation2 + $0x17c] sm:$0xf]
    %v133 = vld [vmem:[#allocation2 + $0x180] sm:$0xf]
    %v134 = vld [vmem:[#allocation2 + $0x184] sm:$0xf]
    %v135 = vld [vmem:[#allocation2 + $0x188] sm:$0xf]
    %v136 = vld [vmem:[#allocation2 + $0x18c] sm:$0xf]
    %v137 = vld [vmem:[#allocation2 + $0x190] sm:$0xf]
    %v138 = vld [vmem:[#allocation2 + $0x194] sm:$0xf]
    %v139 = vld [vmem:[#allocation2 + $0x198] sm:$0xf]
    %v140 = vld [vmem:[#allocation2 + $0x19c] sm:$0xf]
    %v141 = vld [vmem:[#allocation2 + $0x1a0] sm:$0xf]
    %v142 = vld [vmem:[#allocation2 + $0x1a4] sm:$0xf]
    %v143 = vld [vmem:[#allocation2 + $0x1a8] sm:$0xf]
    %v144 = vld [vmem:[#allocation2 + $0x1ac] sm:$0xf]
    %v145 = vld [vmem:[#allocation2 + $0x1b0] sm:$0xf]
    %v146 = vld [vmem:[#allocation2 + $0x1b4] sm:$0xf]
    %v147 = vld [vmem:[#allocation2 + $0x1b8] sm:$0xf]
    %v148 = vld [vmem:[#allocation2 + $0x1bc] sm:$0xf]
    %v149 = vld [vmem:[#allocation2 + $0x1c0] sm:$0xf]
    %v150 = vld [vmem:[#allocation2 + $0x1c4] sm:$0xf]
    %v151 = vld [vmem:[#allocation2 + $0x1c8] sm:$0xf]
    %v152 = vld [vmem:[#allocation2 + $0x1cc] sm:$0xf]
    %v153 = vld [vmem:[#allocation2 + $0x1d0] sm:$0xf]
    %v154 = vld [vmem:[#allocation2 + $0x1d4] sm:$0xf]
    %v155 = vld [vmem:[#allocation2 + $0x1d8] sm:$0xf]
    %v156 = vld [vmem:[#allocation2 + $0x1dc] sm:$0xf]
    %v157 = vld [vmem:[#allocation2 + $0x1e0] sm:$0xf]
    %v158 = vld [vmem:[#allocation2 + $0x1e4] sm:$0xf]
    %v159 = vld [vmem:[#allocation2 + $0x1e8] sm:$0xf]
    %v160 = vld [vmem:[#allocation2 + $0x1ec] sm:$0xf]
    %v161 = vld [vmem:[#allocation2 + $0x1f0] sm:$0xf]
    %v162 = vld [vmem:[#allocation2 + $0x1f4] sm:$0xf]
    %v163 = vld [vmem:[#allocation2 + $0x1f8] sm:$0xf]
    %v164 = vld [vmem:[#allocation2 + $0x1fc] sm:$0xf]
    %v165 = vld [vmem:[%s2] sm:$0x1]
    %v167 = vlaneseq
    %v168 = vshrl.u32 %v167, 7
    %v169 = vsub.s32 0, %v168
    %v170 = vrot.slane %v165, %v169
    %v180 = vunpack.c.l.b16 %v29
    %v181 = vunpack.c.h.b16 %v29
    %v182 = vunpack.c.l.b16 %v30
    %v183 = vunpack.c.h.b16 %v30
    %v184 = vunpack.c.l.b16 %v31
    %v185 = vunpack.c.h.b16 %v31
    %v186 = vunpack.c.l.b16 %v32
    %v187 = vunpack.c.h.b16 %v32
    %v188 = vunpack.c.l.b16 %v33
    %v189 = vunpack.c.h.b16 %v33
    %v190 = vunpack.c.l.b16 %v34
    %v191 = vunpack.c.h.b16 %v34
    %v192 = vunpack.c.l.b16 %v35
    %v193 = vunpack.c.h.b16 %v35
    %v194 = vunpack.c.l.b16 %v36
    %v195 = vunpack.c.h.b16 %v36
    %v196 = vpack.c.b16 %v188, %v180
    %v197 = vpack.c.b16 %v189, %v181
    %v198 = vpack.c.b16 %v190, %v182
    %v199 = vpack.c.b16 %v191, %v183
    %v200 = vpack.c.b16 %v192, %v184
    %v201 = vpack.c.b16 %v193, %v185
    %v202 = vpack.c.b16 %v194, %v186
    %v203 = vpack.c.b16 %v195, %v187
    %v340 = vunpack.c.l.b16 %v37
    %v341 = vunpack.c.l.b16 %v38
    %v342 = vunpack.c.l.b16 %v39
    %v343 = vunpack.c.l.b16 %v40
    %v344 = vunpack.c.l.b16 %v41
    %v345 = vunpack.c.l.b16 %v42
    %v346 = vunpack.c.l.b16 %v43
    %v347 = vunpack.c.l.b16 %v44
    %v348 = vunpack.c.l.b16 %v45
    %v349 = vunpack.c.l.b16 %v46
    %v350 = vunpack.c.l.b16 %v47
    %v351 = vunpack.c.l.b16 %v48
    %v352 = vunpack.c.l.b16 %v49
    %v353 = vunpack.c.l.b16 %v50
    %v354 = vunpack.c.l.b16 %v51
    %v355 = vunpack.c.l.b16 %v52
    %v356 = vunpack.c.l.b16 %v53
    %v357 = vunpack.c.l.b16 %v54
    %v358 = vunpack.c.l.b16 %v55
    %v359 = vunpack.c.l.b16 %v56
    %v360 = vunpack.c.l.b16 %v57
    %v361 = vunpack.c.l.b16 %v58
    %v362 = vunpack.c.l.b16 %v59
    %v363 = vunpack.c.l.b16 %v60
    %v364 = vunpack.c.l.b16 %v61
    %v365 = vunpack.c.l.b16 %v62
    %v366 = vunpack.c.l.b16 %v63
    %v367 = vunpack.c.l.b16 %v64
    %v368 = vunpack.c.l.b16 %v65
    %v369 = vunpack.c.l.b16 %v66
    %v370 = vunpack.c.l.b16 %v67
    %v371 = vunpack.c.l.b16 %v68
    %v372 = vunpack.c.l.b16 %v69
    %v373 = vunpack.c.l.b16 %v70
    %v374 = vunpack.c.l.b16 %v71
    %v375 = vunpack.c.l.b16 %v72
    %v376 = vunpack.c.l.b16 %v73
    %v377 = vunpack.c.l.b16 %v74
    %v378 = vunpack.c.l.b16 %v75
    %v379 = vunpack.c.l.b16 %v76
    %v380 = vunpack.c.l.b16 %v77
    %v381 = vunpack.c.l.b16 %v78
    %v382 = vunpack.c.l.b16 %v79
    %v383 = vunpack.c.l.b16 %v80
    %v384 = vunpack.c.l.b16 %v81
    %v385 = vunpack.c.l.b16 %v82
    %v386 = vunpack.c.l.b16 %v83
    %v387 = vunpack.c.l.b16 %v84
    %v388 = vunpack.c.l.b16 %v85
    %v389 = vunpack.c.l.b16 %v86
    %v390 = vunpack.c.l.b16 %v87
    %v391 = vunpack.c.l.b16 %v88
    %v392 = vunpack.c.l.b16 %v89
    %v393 = vunpack.c.l.b16 %v90
    %v394 = vunpack.c.l.b16 %v91
    %v395 = vunpack.c.l.b16 %v92
    %v396 = vunpack.c.l.b16 %v93
    %v397 = vunpack.c.l.b16 %v94
    %v398 = vunpack.c.l.b16 %v95
    %v399 = vunpack.c.l.b16 %v96
    %v400 = vunpack.c.l.b16 %v97
    %v401 = vunpack.c.l.b16 %v98
    %v402 = vunpack.c.l.b16 %v99
    %v403 = vunpack.c.l.b16 %v100
    %v404 = vunpack.c.l.b16 %v101
    %v405 = vunpack.c.l.b16 %v102
    %v406 = vunpack.c.l.b16 %v103
    %v407 = vunpack.c.l.b16 %v104
    %v408 = vunpack.c.l.b16 %v105
    %v409 = vunpack.c.l.b16 %v106
    %v410 = vunpack.c.l.b16 %v107
    %v411 = vunpack.c.l.b16 %v108
    %v412 = vunpack.c.l.b16 %v109
    %v413 = vunpack.c.l.b16 %v110
    %v414 = vunpack.c.l.b16 %v111
    %v415 = vunpack.c.l.b16 %v112
    %v416 = vunpack.c.l.b16 %v113
    %v417 = vunpack.c.l.b16 %v114
    %v418 = vunpack.c.l.b16 %v115
    %v419 = vunpack.c.l.b16 %v116
    %v420 = vunpack.c.l.b16 %v117
    %v421 = vunpack.c.l.b16 %v118
    %v422 = vunpack.c.l.b16 %v119
    %v423 = vunpack.c.l.b16 %v120
    %v424 = vunpack.c.l.b16 %v121
    %v425 = vunpack.c.l.b16 %v122
    %v426 = vunpack.c.l.b16 %v123
    %v427 = vunpack.c.l.b16 %v124
    %v428 = vunpack.c.l.b16 %v125
    %v429 = vunpack.c.l.b16 %v126
    %v430 = vunpack.c.l.b16 %v127
    %v431 = vunpack.c.l.b16 %v128
    %v432 = vunpack.c.l.b16 %v129
    %v433 = vunpack.c.l.b16 %v130
    %v434 = vunpack.c.l.b16 %v131
    %v435 = vunpack.c.l.b16 %v132
    %v436 = vunpack.c.l.b16 %v133
    %v437 = vunpack.c.l.b16 %v134
    %v438 = vunpack.c.l.b16 %v135
    %v439 = vunpack.c.l.b16 %v136
    %v440 = vunpack.c.l.b16 %v137
    %v441 = vunpack.c.l.b16 %v138
    %v442 = vunpack.c.l.b16 %v139
    %v443 = vunpack.c.l.b16 %v140
    %v444 = vunpack.c.l.b16 %v141
    %v445 = vunpack.c.l.b16 %v142
    %v446 = vunpack.c.l.b16 %v143
    %v447 = vunpack.c.l.b16 %v144
    %v448 = vunpack.c.l.b16 %v145
    %v449 = vunpack.c.l.b16 %v146
    %v450 = vunpack.c.l.b16 %v147
    %v451 = vunpack.c.l.b16 %v148
    %v452 = vunpack.c.l.b16 %v149
    %v453 = vunpack.c.l.b16 %v150
    %v454 = vunpack.c.l.b16 %v151
    %v455 = vunpack.c.l.b16 %v152
    %v456 = vunpack.c.l.b16 %v153
    %v457 = vunpack.c.l.b16 %v154
    %v458 = vunpack.c.l.b16 %v155
    %v459 = vunpack.c.l.b16 %v156
    %v460 = vunpack.c.l.b16 %v157
    %v461 = vunpack.c.l.b16 %v158
    %v462 = vunpack.c.l.b16 %v159
    %v463 = vunpack.c.l.b16 %v160
    %v464 = vunpack.c.l.b16 %v161
    %v465 = vunpack.c.l.b16 %v162
    %v466 = vunpack.c.l.b16 %v163
    %v467 = vunpack.c.l.b16 %v164
    %v468 = vpack.c.b16 %v341, %v340
    %v469 = vpack.c.b16 %v343, %v342
    %v470 = vpack.c.b16 %v345, %v344
    %v471 = vpack.c.b16 %v347, %v346
    %v472 = vpack.c.b16 %v349, %v348
    %v473 = vpack.c.b16 %v351, %v350
    %v474 = vpack.c.b16 %v353, %v352
    %v475 = vpack.c.b16 %v355, %v354
    %v476 = vpack.c.b16 %v357, %v356
    %v477 = vpack.c.b16 %v359, %v358
    %v478 = vpack.c.b16 %v361, %v360
    %v479 = vpack.c.b16 %v363, %v362
    %v480 = vpack.c.b16 %v365, %v364
    %v481 = vpack.c.b16 %v367, %v366
    %v482 = vpack.c.b16 %v369, %v368
    %v483 = vpack.c.b16 %v371, %v370
    %v484 = vpack.c.b16 %v373, %v372
    %v485 = vpack.c.b16 %v375, %v374
    %v486 = vpack.c.b16 %v377, %v376
    %v487 = vpack.c.b16 %v379, %v378
    %v488 = vpack.c.b16 %v381, %v380
    %v489 = vpack.c.b16 %v383, %v382
    %v490 = vpack.c.b16 %v385, %v384
    %v491 = vpack.c.b16 %v387, %v386
    %v492 = vpack.c.b16 %v389, %v388
    %v493 = vpack.c.b16 %v391, %v390
    %v494 = vpack.c.b16 %v393, %v392
    %v495 = vpack.c.b16 %v395, %v394
    %v496 = vpack.c.b16 %v397, %v396
    %v497 = vpack.c.b16 %v399, %v398
    %v498 = vpack.c.b16 %v401, %v400
    %v499 = vpack.c.b16 %v403, %v402
    %v500 = vpack.c.b16 %v405, %v404
    %v501 = vpack.c.b16 %v407, %v406
    %v502 = vpack.c.b16 %v409, %v408
    %v503 = vpack.c.b16 %v411, %v410
    %v504 = vpack.c.b16 %v413, %v412
    %v505 = vpack.c.b16 %v415, %v414
    %v506 = vpack.c.b16 %v417, %v416
    %v507 = vpack.c.b16 %v419, %v418
    %v508 = vpack.c.b16 %v421, %v420
    %v509 = vpack.c.b16 %v423, %v422
    %v510 = vpack.c.b16 %v425, %v424
    %v511 = vpack.c.b16 %v427, %v426
    %v512 = vpack.c.b16 %v429, %v428
    %v513 = vpack.c.b16 %v431, %v430
    %v514 = vpack.c.b16 %v433, %v432
    %v515 = vpack.c.b16 %v435, %v434
    %v516 = vpack.c.b16 %v437, %v436
    %v517 = vpack.c.b16 %v439, %v438
    %v518 = vpack.c.b16 %v441, %v440
    %v519 = vpack.c.b16 %v443, %v442
    %v520 = vpack.c.b16 %v445, %v444
    %v521 = vpack.c.b16 %v447, %v446
    %v522 = vpack.c.b16 %v449, %v448
    %v523 = vpack.c.b16 %v451, %v450
    %v524 = vpack.c.b16 %v453, %v452
    %v525 = vpack.c.b16 %v455, %v454
    %v526 = vpack.c.b16 %v457, %v456
    %v527 = vpack.c.b16 %v459, %v458
    %v528 = vpack.c.b16 %v461, %v460
    %v529 = vpack.c.b16 %v463, %v462
    %v530 = vpack.c.b16 %v465, %v464
    %v531 = vpack.c.b16 %v467, %v466
    %596 = vmatprep.subr.bf16.mxu0 0
    %597 = vmatpush1.bf16.msra.mxu0 %v468
    %598 = vmatprep.subr.bf16.mxu0 0
    %599 = vmatpush1.bf16.msra.mxu0 %v469
    %600 = vmatprep.subr.bf16.mxu0 0
    %601 = vmatpush1.bf16.msra.mxu0 %v470
    %602 = vmatprep.subr.bf16.mxu0 0
    %603 = vmatpush1.bf16.msra.mxu0 %v471
    %604 = vmatprep.subr.bf16.mxu0 0
    %605 = vmatpush1.bf16.msra.mxu0 %v472
    %606 = vmatprep.subr.bf16.mxu0 0
    %607 = vmatpush1.bf16.msra.mxu0 %v473
    %608 = vmatprep.subr.bf16.mxu0 0
    %609 = vmatpush1.bf16.msra.mxu0 %v474
    %610 = vmatprep.subr.bf16.mxu0 0
    %611 = vmatpush1.bf16.msra.mxu0 %v475
    %612 = vmatprep.subr.bf16.mxu0 0
    %613 = vmatpush1.bf16.msra.mxu0 %v476
    %614 = vmatprep.subr.bf16.mxu0 0
    %615 = vmatpush1.bf16.msra.mxu0 %v477
    %616 = vmatprep.subr.bf16.mxu0 0
    %617 = vmatpush1.bf16.msra.mxu0 %v478
    %618 = vmatprep.subr.bf16.mxu0 0
    %619 = vmatpush1.bf16.msra.mxu0 %v479
    %620 = vmatprep.subr.bf16.mxu0 0
    %621 = vmatpush1.bf16.msra.mxu0 %v480
    %622 = vmatprep.subr.bf16.mxu0 0
    %623 = vmatpush1.bf16.msra.mxu0 %v481
    %624 = vmatprep.subr.bf16.mxu0 0
    %625 = vmatpush1.bf16.msra.mxu0 %v482
    %626 = vmatprep.subr.bf16.mxu0 0
    %627 = vmatpush1.bf16.msra.mxu0 %v483
    %628 = vmatprep.mubr.bf16.mxu0 %v197
    %629 = vmatmul.mubr.bf16.gmra.mrb[0].mxu0 %v196
    %v630 = vpop.f32.mrb[0].mxu0
    %v631 = vadd.f32 %v170, %v630
    %v632 = vpop.f32.mrb[0].mxu0
    %v633 = vpop.f32.mrb[0].mxu0
    %v634 = vadd.f32 %v170, %v633
    %v635 = vpop.f32.mrb[0].mxu0
    %636 = vdwg.mxu0
    %637 = vmatprep.subr.bf16.mxu0 0
    %638 = vmatpush1.bf16.msra.mxu0 %v484
    %639 = vmatprep.subr.bf16.mxu0 0
    %640 = vmatpush1.bf16.msra.mxu0 %v485
    %641 = vmatprep.subr.bf16.mxu0 0
    %642 = vmatpush1.bf16.msra.mxu0 %v486
    %643 = vmatprep.subr.bf16.mxu0 0
    %644 = vmatpush1.bf16.msra.mxu0 %v487
    %645 = vmatprep.subr.bf16.mxu0 0
    %646 = vmatpush1.bf16.msra.mxu0 %v488
    %647 = vmatprep.subr.bf16.mxu0 0
    %648 = vmatpush1.bf16.msra.mxu0 %v489
    %649 = vmatprep.subr.bf16.mxu0 0
    %650 = vmatpush1.bf16.msra.mxu0 %v490
    %651 = vmatprep.subr.bf16.mxu0 0
    %652 = vmatpush1.bf16.msra.mxu0 %v491
    %653 = vmatprep.subr.bf16.mxu0 0
    %654 = vmatpush1.bf16.msra.mxu0 %v492
    %655 = vmatprep.subr.bf16.mxu0 0
    %656 = vmatpush1.bf16.msra.mxu0 %v493
    %657 = vmatprep.subr.bf16.mxu0 0
    %658 = vmatpush1.bf16.msra.mxu0 %v494
    %659 = vmatprep.subr.bf16.mxu0 0
    %660 = vmatpush1.bf16.msra.mxu0 %v495
    %661 = vmatprep.subr.bf16.mxu0 0
    %662 = vmatpush1.bf16.msra.mxu0 %v496
    %663 = vmatprep.subr.bf16.mxu0 0
    %664 = vmatpush1.bf16.msra.mxu0 %v497
    %665 = vmatprep.subr.bf16.mxu0 0
    %666 = vmatpush1.bf16.msra.mxu0 %v498
    %667 = vmatprep.subr.bf16.mxu0 0
    %668 = vmatpush1.bf16.msra.mxu0 %v499
    %669 = vmatprep.mubr.bf16.mxu0 %v199
    %670 = vmatmul.mubr.bf16.gmra.mrb[0].mxu0 %v198
    %v671 = vpop.f32.mrb[0].mxu0
    %v672 = vadd.f32 %v631, %v671
    %v673 = vpop.f32.mrb[0].mxu0
    %v674 = vpop.f32.mrb[0].mxu0
    %v675 = vadd.f32 %v634, %v674
    %v676 = vpop.f32.mrb[0].mxu0
    %677 = vdwg.mxu0
    %678 = vmatprep.subr.bf16.mxu0 0
    %679 = vmatpush1.bf16.msra.mxu0 %v500
    %680 = vmatprep.subr.bf16.mxu0 0
    %681 = vmatpush1.bf16.msra.mxu0 %v501
    %682 = vmatprep.subr.bf16.mxu0 0
    %683 = vmatpush1.bf16.msra.mxu0 %v502
    %684 = vmatprep.subr.bf16.mxu0 0
    %685 = vmatpush1.bf16.msra.mxu0 %v503
    %686 = vmatprep.subr.bf16.mxu0 0
    %687 = vmatpush1.bf16.msra.mxu0 %v504
    %688 = vmatprep.subr.bf16.mxu0 0
    %689 = vmatpush1.bf16.msra.mxu0 %v505
    %690 = vmatprep.subr.bf16.mxu0 0
    %691 = vmatpush1.bf16.msra.mxu0 %v506
    %692 = vmatprep.subr.bf16.mxu0 0
    %693 = vmatpush1.bf16.msra.mxu0 %v507
    %694 = vmatprep.subr.bf16.mxu0 0
    %695 = vmatpush1.bf16.msra.mxu0 %v508
    %696 = vmatprep.subr.bf16.mxu0 0
    %697 = vmatpush1.bf16.msra.mxu0 %v509
    %698 = vmatprep.subr.bf16.mxu0 0
    %699 = vmatpush1.bf16.msra.mxu0 %v510
    %700 = vmatprep.subr.bf16.mxu0 0
    %701 = vmatpush1.bf16.msra.mxu0 %v511
    %702 = vmatprep.subr.bf16.mxu0 0
    %703 = vmatpush1.bf16.msra.mxu0 %v512
    %704 = vmatprep.subr.bf16.mxu0 0
    %705 = vmatpush1.bf16.msra.mxu0 %v513
    %706 = vmatprep.subr.bf16.mxu0 0
    %707 = vmatpush1.bf16.msra.mxu0 %v514
    %708 = vmatprep.subr.bf16.mxu0 0
    %709 = vmatpush1.bf16.msra.mxu0 %v515
    %710 = vmatprep.mubr.bf16.mxu0 %v201
    %711 = vmatmul.mubr.bf16.gmra.mrb[0].mxu0 %v200
    %v712 = vpop.f32.mrb[0].mxu0
    %v713 = vadd.f32 %v672, %v712
    %v714 = vpop.f32.mrb[0].mxu0
    %v715 = vpop.f32.mrb[0].mxu0
    %v716 = vadd.f32 %v675, %v715
    %v717 = vpop.f32.mrb[0].mxu0
    %718 = vdwg.mxu0
    %719 = vmatprep.subr.bf16.mxu0 0
    %720 = vmatpush1.bf16.msra.mxu0 %v516
    %721 = vmatprep.subr.bf16.mxu0 0
    %722 = vmatpush1.bf16.msra.mxu0 %v517
    %723 = vmatprep.subr.bf16.mxu0 0
    %724 = vmatpush1.bf16.msra.mxu0 %v518
    %725 = vmatprep.subr.bf16.mxu0 0
    %726 = vmatpush1.bf16.msra.mxu0 %v519
    %727 = vmatprep.subr.bf16.mxu0 0
    %728 = vmatpush1.bf16.msra.mxu0 %v520
    %729 = vmatprep.subr.bf16.mxu0 0
    %730 = vmatpush1.bf16.msra.mxu0 %v521
    %731 = vmatprep.subr.bf16.mxu0 0
    %732 = vmatpush1.bf16.msra.mxu0 %v522
    %733 = vmatprep.subr.bf16.mxu0 0
    %734 = vmatpush1.bf16.msra.mxu0 %v523
    %735 = vmatprep.subr.bf16.mxu0 0
    %736 = vmatpush1.bf16.msra.mxu0 %v524
    %737 = vmatprep.subr.bf16.mxu0 0
    %738 = vmatpush1.bf16.msra.mxu0 %v525
    %739 = vmatprep.subr.bf16.mxu0 0
    %740 = vmatpush1.bf16.msra.mxu0 %v526
    %741 = vmatprep.subr.bf16.mxu0 0
    %742 = vmatpush1.bf16.msra.mxu0 %v527
    %743 = vmatprep.subr.bf16.mxu0 0
    %744 = vmatpush1.bf16.msra.mxu0 %v528
    %745 = vmatprep.subr.bf16.mxu0 0
    %746 = vmatpush1.bf16.msra.mxu0 %v529
    %747 = vmatprep.subr.bf16.mxu0 0
    %748 = vmatpush1.bf16.msra.mxu0 %v530
    %749 = vmatprep.subr.bf16.mxu0 0
    %750 = vmatpush1.bf16.msra.mxu0 %v531
    %751 = vmatprep.mubr.bf16.mxu0 %v203
    %752 = vmatmul.mubr.bf16.gmra.mrb[0].mxu0 %v202
    %v753 = vpop.f32.mrb[0].mxu0
    %v754 = vadd.f32 %v713, %v753
    %v755 = vpop.f32.mrb[0].mxu0
    %v756 = vpop.f32.mrb[0].mxu0
    %v757 = vadd.f32 %v716, %v756
    %v758 = vpop.f32.mrb[0].mxu0
    %759 = vdwg.mxu0
    %v760 = vmax.f32 %v754, 0.0
    %v761 = vmax.f32 %v757, 0.0
    %762 = vst [vmem:[%s3] sm:$0xff] %v760
    %763 = vst [vmem:[%s3 + $0x8] sm:$0xff] %v761
    // Predicated region
    $region18: #{goal_state_forward.4} parent=1 // pred_check
      _
    $region19: #{goal_state_forward.4} parent=1 // pred_check_branch
      %765 = sbr.rel (0) target = $region21
    $region20: #{goal_state_forward.4} parent=1 // pred_region
      _
    $region21: #{goal_state_forward.4} parent=1 // pred_fallthru
      _
    // Predicated region
    $region22: #{goal_state_forward.4} parent=1 // pred_check
      _
    $region23: #{goal_state_forward.4} parent=1 // pred_check_branch
      %767 = sbr.rel (0) target = $region25
    $region24: #{goal_state_forward.4} parent=1 // pred_region
      _
    $region25: #{goal_state_forward.4} parent=1 // pred_fallthru
      _
    %768 = vsyncpa [#allocation3], 1

// kernel: goal_state_forward.5
$region0: #{goal_state_forward.5}
  #allocation0 [shape = 'u32[]', space=smem, size = 0x4, offset = 0x4, fixed_abs, tag = 'smem constant byte address 0x4 - core index']
  #allocation1 [shape = 'u32[144,128]{1,0:T(1,128)}', space=vmem, size = 0x12000, scoped, tag = 'internal scratch']
  %s0 = inlined_call_operand.vmem [shape: bf16[32,256], index: 0, kind: input, shape index: {}]
  %s1 = inlined_call_operand.vmem [shape: bf16[256,128], index: 1, kind: input, shape index: {}]
  %s2 = inlined_call_operand.vmem [shape: bf16[128,128], index: 2, kind: input, shape index: {}]
  %s3 = inlined_call_operand.vmem [shape: bf16[128,128], index: 3, kind: input, shape index: {}]
  %s4 = inlined_call_operand.vmem [shape: f32[4,128], index: 4, kind: input, shape index: {}]
  %s5 = inlined_call_operand.vmem [shape: f32[32,128], index: 5, kind: output, shape index: {}]
  %s6 = sld [smem:[#allocation0]]
  $region30: #{goal_state_forward.5} parent=0
    _
  %s8 = ssub.s32 1, %s6
  %s9 = scalar_select 0, %s8, %s6
  // Predicated region
  $region2: #{goal_state_forward.5} parent=0 // pred_check
    _
  $region3: #{goal_state_forward.5} parent=0 // pred_check_branch
    %11 = sbr.rel (0) target = $region5
  $region4: #{goal_state_forward.5} parent=0 // pred_region
    _
  $region5: #{goal_state_forward.5} parent=0 // pred_fallthru
    _
  // Predicated region
  $region6: #{goal_state_forward.5} parent=0 // pred_check
    _
  $region7: #{goal_state_forward.5} parent=0 // pred_check_branch
    %13 = sbr.rel (0) target = $region9
  $region8: #{goal_state_forward.5} parent=0 // pred_region
    _
  $region9: #{goal_state_forward.5} parent=0 // pred_fallthru
    _
  // Predicated region
  $region10: #{goal_state_forward.5} parent=0 // pred_check
    _
  $region11: #{goal_state_forward.5} parent=0 // pred_check_branch
    %15 = sbr.rel (0) target = $region13
  $region12: #{goal_state_forward.5} parent=0 // pred_region
    _
  $region13: #{goal_state_forward.5} parent=0 // pred_fallthru
    _
  // Predicated region
  $region14: #{goal_state_forward.5} parent=0 // pred_check
    _
  $region15: #{goal_state_forward.5} parent=0 // pred_check_branch
    %17 = sbr.rel (0) target = $region17
  $region16: #{goal_state_forward.5} parent=0 // pred_region
    _
  $region17: #{goal_state_forward.5} parent=0 // pred_fallthru
    _
  // Predicated region
  $region18: #{goal_state_forward.5} parent=0 // pred_check
    _
  $region19: #{goal_state_forward.5} parent=0 // pred_check_branch
    %19 = sbr.rel (0) target = $region21
  $region20: #{goal_state_forward.5} parent=0 // pred_region
    _
  $region21: #{goal_state_forward.5} parent=0 // pred_fallthru
    _
  %v21 = vld [vmem:[%s4] sm:$0xf]
  %v22 = vld [vmem:[%s0] sm:$0xff]
  %v23 = vld [vmem:[%s0 + $0x8] sm:$0xff]
  %v24 = vld [vmem:[%s0 + $0x10] sm:$0xff]
  %v25 = vld [vmem:[%s0 + $0x18] sm:$0xff]
  %v26 = vld [vmem:[%s1] sm:$0xf]
  %v27 = vld [vmem:[%s1 + $0x4] sm:$0xf]
  %v28 = vld [vmem:[%s1 + $0x8] sm:$0xf]
  %v29 = vld [vmem:[%s1 + $0xc] sm:$0xf]
  %v30 = vld [vmem:[%s1 + $0x10] sm:$0xf]
  %v31 = vld [vmem:[%s1 + $0x14] sm:$0xf]
  %v32 = vld [vmem:[%s1 + $0x18] sm:$0xf]
  %v33 = vld [vmem:[%s1 + $0x1c] sm:$0xf]
  %v34 = vld [vmem:[%s1 + $0x20] sm:$0xf]
  %v35 = vld [vmem:[%s1 + $0x24] sm:$0xf]
  %v36 = vld [vmem:[%s1 + $0x28] sm:$0xf]
  %v37 = vld [vmem:[%s1 + $0x2c] sm:$0xf]
  %v38 = vld [vmem:[%s1 + $0x30] sm:$0xf]
  %v39 = vld [vmem:[%s1 + $0x34] sm:$0xf]
  %v40 = vld [vmem:[%s1 + $0x38] sm:$0xf]
  %v41 = vld [vmem:[%s1 + $0x3c] sm:$0xf]
  %v42 = vld [vmem:[%s1 + $0x40] sm:$0xf]
  %v43 = vld [vmem:[%s1 + $0x44] sm:$0xf]
  %v44 = vld [vmem:[%s1 + $0x48] sm:$0xf]
  %v45 = vld [vmem:[%s1 + $0x4c] sm:$0xf]
  %v46 = vld [vmem:[%s1 + $0x50] sm:$0xf]
  %v47 = vld [vmem:[%s1 + $0x54] sm:$0xf]
  %v48 = vld [vmem:[%s1 + $0x58] sm:$0xf]
  %v49 = vld [vmem:[%s1 + $0x5c] sm:$0xf]
  %v50 = vld [vmem:[%s1 + $0x60] sm:$0xf]
  %v51 = vld [vmem:[%s1 + $0x64] sm:$0xf]
  %v52 = vld [vmem:[%s1 + $0x68] sm:$0xf]
  %v53 = vld [vmem:[%s1 + $0x6c] sm:$0xf]
  %v54 = vld [vmem:[%s1 + $0x70] sm:$0xf]
  %v55 = vld [vmem:[%s1 + $0x74] sm:$0xf]
  %v56 = vld [vmem:[%s1 + $0x78] sm:$0xf]
  %v57 = vld [vmem:[%s1 + $0x7c] sm:$0xf]
  %v58 = vlaneseq
  %v59 = vshrl.u32 %v58, 7
  %v60 = vsub.s32 0, %v59
  %v61 = vrot.slane %v21, %v60
  %v66 = vunpack.c.l.b16 %v22
  %v67 = vunpack.c.h.b16 %v22
  %v68 = vunpack.c.l.b16 %v23
  %v69 = vunpack.c.h.b16 %v23
  %v70 = vunpack.c.l.b16 %v24
  %v71 = vunpack.c.h.b16 %v24
  %v72 = vunpack.c.l.b16 %v25
  %v73 = vunpack.c.h.b16 %v25
  %v74 = vpack.c.b16 %v68, %v66
  %v75 = vpack.c.b16 %v69, %v67
  %v76 = vpack.c.b16 %v72, %v70
  %v77 = vpack.c.b16 %v73, %v71
  %v114 = vunpack.c.l.b16 %v26
  %v115 = vunpack.c.l.b16 %v27
  %v116 = vunpack.c.l.b16 %v28
  %v117 = vunpack.c.l.b16 %v29
  %v118 = vunpack.c.l.b16 %v30
  %v119 = vunpack.c.l.b16 %v31
  %v120 = vunpack.c.l.b16 %v32
  %v121 = vunpack.c.l.b16 %v33
  %v122 = vunpack.c.l.b16 %v34
  %v123 = vunpack.c.l.b16 %v35
  %v124 = vunpack.c.l.b16 %v36
  %v125 = vunpack.c.l.b16 %v37
  %v126 = vunpack.c.l.b16 %v38
  %v127 = vunpack.c.l.b16 %v39
  %v128 = vunpack.c.l.b16 %v40
  %v129 = vunpack.c.l.b16 %v41
  %v130 = vunpack.c.l.b16 %v42
  %v131 = vunpack.c.l.b16 %v43
  %v132 = vunpack.c.l.b16 %v44
  %v133 = vunpack.c.l.b16 %v45
  %v134 = vunpack.c.l.b16 %v46
  %v135 = vunpack.c.l.b16 %v47
  %v136 = vunpack.c.l.b16 %v48
  %v137 = vunpack.c.l.b16 %v49
  %v138 = vunpack.c.l.b16 %v50
  %v139 = vunpack.c.l.b16 %v51
  %v140 = vunpack.c.l.b16 %v52
  %v141 = vunpack.c.l.b16 %v53
  %v142 = vunpack.c.l.b16 %v54
  %v143 = vunpack.c.l.b16 %v55
  %v144 = vunpack.c.l.b16 %v56
  %v145 = vunpack.c.l.b16 %v57
  %v146 = vpack.c.b16 %v115, %v114
  %v147 = vpack.c.b16 %v117, %v116
  %v148 = vpack.c.b16 %v119, %v118
  %v149 = vpack.c.b16 %v121, %v120
  %v150 = vpack.c.b16 %v123, %v122
  %v151 = vpack.c.b16 %v125, %v124
  %v152 = vpack.c.b16 %v127, %v126
  %v153 = vpack.c.b16 %v129, %v128
  %v154 = vpack.c.b16 %v131, %v130
  %v155 = vpack.c.b16 %v133, %v132
  %v156 = vpack.c.b16 %v135, %v134
  %v157 = vpack.c.b16 %v137, %v136
  %v158 = vpack.c.b16 %v139, %v138
  %v159 = vpack.c.b16 %v141, %v140
  %v160 = vpack.c.b16 %v143, %v142
  %v161 = vpack.c.b16 %v145, %v144
  %178 = vmatprep.subr.bf16.mxu0 0
  %179 = vmatpush1.bf16.msra.mxu0 %v146
  %180 = vmatprep.subr.bf16.mxu0 0
  %181 = vmatpush1.bf16.msra.mxu0 %v147
  %182 = vmatprep.subr.bf16.mxu0 0
  %183 = vmatpush1.bf16.msra.mxu0 %v148
  %184 = vmatprep.subr.bf16.mxu0 0
  %185 = vmatpush1.bf16.msra.mxu0 %v149
  %186 = vmatprep.subr.bf16.mxu0 0
  %187 = vmatpush1.bf16.msra.mxu0 %v150
  %188 = vmatprep.subr.bf16.mxu0 0
  %189 = vmatpush1.bf16.msra.mxu0 %v151
  %190 = vmatprep.subr.bf16.mxu0 0
  %191 = vmatpush1.bf16.msra.mxu0 %v152
  %192 = vmatprep.subr.bf16.mxu0 0
  %193 = vmatpush1.bf16.msra.mxu0 %v153
  %194 = vmatprep.subr.bf16.mxu0 0
  %195 = vmatpush1.bf16.msra.mxu0 %v154
  %196 = vmatprep.subr.bf16.mxu0 0
  %197 = vmatpush1.bf16.msra.mxu0 %v155
  %198 = vmatprep.subr.bf16.mxu0 0
  %199 = vmatpush1.bf16.msra.mxu0 %v156
  %200 = vmatprep.subr.bf16.mxu0 0
  %201 = vmatpush1.bf16.msra.mxu0 %v157
  %202 = vmatprep.subr.bf16.mxu0 0
  %203 = vmatpush1.bf16.msra.mxu0 %v158
  %204 = vmatprep.subr.bf16.mxu0 0
  %205 = vmatpush1.bf16.msra.mxu0 %v159
  %206 = vmatprep.subr.bf16.mxu0 0
  %207 = vmatpush1.bf16.msra.mxu0 %v160
  %208 = vmatprep.subr.bf16.mxu0 0
  %209 = vmatpush1.bf16.msra.mxu0 %v161
  %210 = vmatprep.mubr.bf16.mxu0 %v75
  %211 = vmatmul.mubr.bf16.gmra.mrb[0].mxu0 %v74
  %v212 = vpop.f32.mrb[0].mxu0
  %v213 = vadd.f32 %v61, %v212
  %v214 = vpop.f32.mrb[0].mxu0
  %v215 = vpop.f32.mrb[0].mxu0
  %v216 = vadd.f32 %v61, %v215
  %v217 = vpop.f32.mrb[0].mxu0
  %218 = vmatprep.mubr.bf16.mxu0 %v77
  %219 = vmatmul.mubr.bf16.gmra.mrb[0].mxu0 %v76
  %v220 = vpop.f32.mrb[0].mxu0
  %v221 = vadd.f32 %v61, %v220
  %v222 = vpop.f32.mrb[0].mxu0
  %v223 = vpop.f32.mrb[0].mxu0
  %v224 = vadd.f32 %v61, %v223
  %v225 = vpop.f32.mrb[0].mxu0
  %226 = vdwg.mxu0
  %v227 = vmax.f32 %v213, 0.0
  %v228 = vmax.f32 %v216, 0.0
  %v229 = vmax.f32 %v221, 0.0
  %v230 = vmax.f32 %v224, 0.0
  %v231 = vpack.c.bf16 %v228, %v227
  %v232 = vpack.c.bf16 %v230, %v229
  %v233 = vld [vmem:[%s2] sm:$0xf]
  %v234 = vld [vmem:[%s2 + $0x4] sm:$0xf]
  %v235 = vld [vmem:[%s2 + $0x8] sm:$0xf]
  %v236 = vld [vmem:[%s2 + $0xc] sm:$0xf]
  %v237 = vld [vmem:[%s2 + $0x10] sm:$0xf]
  %v238 = vld [vmem:[%s2 + $0x14] sm:$0xf]
  %v239 = vld [vmem:[%s2 + $0x18] sm:$0xf]
  %v240 = vld [vmem:[%s2 + $0x1c] sm:$0xf]
  %v241 = vld [vmem:[%s2 + $0x20] sm:$0xf]
  %v242 = vld [vmem:[%s2 + $0x24] sm:$0xf]
  %v243 = vld [vmem:[%s2 + $0x28] sm:$0xf]
  %v244 = vld [vmem:[%s2 + $0x2c] sm:$0xf]
  %v245 = vld [vmem:[%s2 + $0x30] sm:$0xf]
  %v246 = vld [vmem:[%s2 + $0x34] sm:$0xf]
  %v247 = vld [vmem:[%s2 + $0x38] sm:$0xf]
  %v248 = vld [vmem:[%s2 + $0x3c] sm:$0xf]
  %v249 = vlaneseq
  %v250 = vshrl.u32 %v249, 7
  %v251 = vsub.s32 1, %v250
  %v252 = vrot.slane %v21, %v251
  %v269 = vunpack.c.l.b16 %v233
  %v270 = vunpack.c.l.b16 %v234
  %v271 = vunpack.c.l.b16 %v235
  %v272 = vunpack.c.l.b16 %v236
  %v273 = vunpack.c.l.b16 %v237
  %v274 = vunpack.c.l.b16 %v238
  %v275 = vunpack.c.l.b16 %v239
  %v276 = vunpack.c.l.b16 %v240
  %v277 = vunpack.c.l.b16 %v241
  %v278 = vunpack.c.l.b16 %v242
  %v279 = vunpack.c.l.b16 %v243
  %v280 = vunpack.c.l.b16 %v244
  %v281 = vunpack.c.l.b16 %v245
  %v282 = vunpack.c.l.b16 %v246
  %v283 = vunpack.c.l.b16 %v247
  %v284 = vunpack.c.l.b16 %v248
  %v285 = vpack.c.b16 %v270, %v269
  %v286 = vpack.c.b16 %v272, %v271
  %v287 = vpack.c.b16 %v274, %v273
  %v288 = vpack.c.b16 %v276, %v275
  %v289 = vpack.c.b16 %v278, %v277
  %v290 = vpack.c.b16 %v280, %v279
  %v291 = vpack.c.b16 %v282, %v281
  %v292 = vpack.c.b16 %v284, %v283
  %301 = vmatprep.subr.bf16.mxu0 0
  %302 = vmatpush1.bf16.msra.mxu0 %v285
  %303 = vmatprep.subr.bf16.mxu0 0
  %304 = vmatpush1.bf16.msra.mxu0 %v286
  %305 = vmatprep.subr.bf16.mxu0 0
  %306 = vmatpush1.bf16.msra.mxu0 %v287
  %307 = vmatprep.subr.bf16.mxu0 0
  %308 = vmatpush1.bf16.msra.mxu0 %v288
  %309 = vmatprep.subr.bf16.mxu0 0
  %310 = vmatpush1.bf16.msra.mxu0 %v289
  %311 = vmatprep.subr.bf16.mxu0 0
  %312 = vmatpush1.bf16.msra.mxu0 %v290
  %313 = vmatprep.subr.bf16.mxu0 0
  %314 = vmatpush1.bf16.msra.mxu0 %v291
  %315 = vmatprep.subr.bf16.mxu0 0
  %316 = vmatpush1.bf16.msra.mxu0 %v292
  %317 = vmatprep.subr.bf16.mxu0 0
  %318 = vmatpush1.bf16.msra.mxu0 0
  %319 = vmatprep.subr.bf16.mxu0 0
  %320 = vmatpush1.bf16.msra.mxu0 0
  %321 = vmatprep.subr.bf16.mxu0 0
  %322 = vmatpush1.bf16.msra.mxu0 0
  %323 = vmatprep.subr.bf16.mxu0 0
  %324 = vmatpush1.bf16.msra.mxu0 0
  %325 = vmatprep.subr.bf16.mxu0 0
  %326 = vmatpush1.bf16.msra.mxu0 0
  %327 = vmatprep.subr.bf16.mxu0 0
  %328 = vmatpush1.bf16.msra.mxu0 0
  %329 = vmatprep.subr.bf16.mxu0 0
  %330 = vmatpush1.bf16.msra.mxu0 0
  %331 = vmatprep.subr.bf16.mxu0 0
  %332 = vmatpush1.bf16.msra.mxu0 0
  %333 = vmatprep.mubr.bf16.mxu0 0
  %334 = vmatmul.mubr.bf16.gmra.mrb[0].mxu0 %v231
  %v335 = vpop.f32.mrb[0].mxu0
  %v336 = vadd.f32 %v252, %v335
  %v337 = vpop.f32.mrb[0].mxu0
  %v338 = vpop.f32.mrb[0].mxu0
  %v339 = vadd.f32 %v252, %v338
  %v340 = vpop.f32.mrb[0].mxu0
  %341 = vmatprep.mubr.bf16.mxu0 0
  %342 = vmatmul.mubr.bf16.gmra.mrb[0].mxu0 %v232
  %v343 = vpop.f32.mrb[0].mxu0
  %v344 = vadd.f32 %v252, %v343
  %v345 = vpop.f32.mrb[0].mxu0
  %v346 = vpop.f32.mrb[0].mxu0
  %v347 = vadd.f32 %v252, %v346
  %v348 = vpop.f32.mrb[0].mxu0
  %349 = vdwg.mxu0
  %v350 = vmax.f32 %v336, 0.0
  %v351 = vmax.f32 %v339, 0.0
  %v352 = vmax.f32 %v344, 0.0
  %v353 = vmax.f32 %v347, 0.0
  %v354 = vpack.c.bf16 %v351, %v350
  %v355 = vpack.c.bf16 %v353, %v352
  %v356 = vld [vmem:[%s3] sm:$0xf]
  %v357 = vld [vmem:[%s3 + $0x4] sm:$0xf]
  %v358 = vld [vmem:[%s3 + $0x8] sm:$0xf]
  %v359 = vld [vmem:[%s3 + $0xc] sm:$0xf]
  %v360 = vld [vmem:[%s3 + $0x10] sm:$0xf]
  %v361 = vld [vmem:[%s3 + $0x14] sm:$0xf]
  %v362 = vld [vmem:[%s3 + $0x18] sm:$0xf]
  %v363 = vld [vmem:[%s3 + $0x1c] sm:$0xf]
  %v364 = vld [vmem:[%s3 + $0x20] sm:$0xf]
  %v365 = vld [vmem:[%s3 + $0x24] sm:$0xf]
  %v366 = vld [vmem:[%s3 + $0x28] sm:$0xf]
  %v367 = vld [vmem:[%s3 + $0x2c] sm:$0xf]
  %v368 = vld [vmem:[%s3 + $0x30] sm:$0xf]
  %v369 = vld [vmem:[%s3 + $0x34] sm:$0xf]
  %v370 = vld [vmem:[%s3 + $0x38] sm:$0xf]
  %v371 = vld [vmem:[%s3 + $0x3c] sm:$0xf]
  %v372 = vlaneseq
  %v373 = vshrl.u32 %v372, 7
  %v374 = vsub.s32 2, %v373
  %v375 = vrot.slane %v21, %v374
  %v392 = vunpack.c.l.b16 %v356
  %v393 = vunpack.c.l.b16 %v357
  %v394 = vunpack.c.l.b16 %v358
  %v395 = vunpack.c.l.b16 %v359
  %v396 = vunpack.c.l.b16 %v360
  %v397 = vunpack.c.l.b16 %v361
  %v398 = vunpack.c.l.b16 %v362
  %v399 = vunpack.c.l.b16 %v363
  %v400 = vunpack.c.l.b16 %v364
  %v401 = vunpack.c.l.b16 %v365
  %v402 = vunpack.c.l.b16 %v366
  %v403 = vunpack.c.l.b16 %v367
  %v404 = vunpack.c.l.b16 %v368
  %v405 = vunpack.c.l.b16 %v369
  %v406 = vunpack.c.l.b16 %v370
  %v407 = vunpack.c.l.b16 %v371
  %v408 = vpack.c.b16 %v393, %v392
  %v409 = vpack.c.b16 %v395, %v394
  %v410 = vpack.c.b16 %v397, %v396
  %v411 = vpack.c.b16 %v399, %v398
  %v412 = vpack.c.b16 %v401, %v400
  %v413 = vpack.c.b16 %v403, %v402
  %v414 = vpack.c.b16 %v405, %v404
  %v415 = vpack.c.b16 %v407, %v406
  %424 = vmatprep.subr.bf16.mxu0 0
  %425 = vmatpush1.bf16.msra.mxu0 %v408
  %426 = vmatprep.subr.bf16.mxu0 0
  %427 = vmatpush1.bf16.msra.mxu0 %v409
  %428 = vmatprep.subr.bf16.mxu0 0
  %429 = vmatpush1.bf16.msra.mxu0 %v410
  %430 = vmatprep.subr.bf16.mxu0 0
  %431 = vmatpush1.bf16.msra.mxu0 %v411
  %432 = vmatprep.subr.bf16.mxu0 0
  %433 = vmatpush1.bf16.msra.mxu0 %v412
  %434 = vmatprep.subr.bf16.mxu0 0
  %435 = vmatpush1.bf16.msra.mxu0 %v413
  %436 = vmatprep.subr.bf16.mxu0 0
  %437 = vmatpush1.bf16.msra.mxu0 %v414
  %438 = vmatprep.subr.bf16.mxu0 0
  %439 = vmatpush1.bf16.msra.mxu0 %v415
  %440 = vmatprep.subr.bf16.mxu0 0
  %441 = vmatpush1.bf16.msra.mxu0 0
  %442 = vmatprep.subr.bf16.mxu0 0
  %443 = vmatpush1.bf16.msra.mxu0 0
  %444 = vmatprep.subr.bf16.mxu0 0
  %445 = vmatpush1.bf16.msra.mxu0 0
  %446 = vmatprep.subr.bf16.mxu0 0
  %447 = vmatpush1.bf16.msra.mxu0 0
  %448 = vmatprep.subr.bf16.mxu0 0
  %449 = vmatpush1.bf16.msra.mxu0 0
  %450 = vmatprep.subr.bf16.mxu0 0
  %451 = vmatpush1.bf16.msra.mxu0 0
  %452 = vmatprep.subr.bf16.mxu0 0
  %453 = vmatpush1.bf16.msra.mxu0 0
  %454 = vmatprep.subr.bf16.mxu0 0
  %455 = vmatpush1.bf16.msra.mxu0 0
  %456 = vmatprep.mubr.bf16.mxu0 0
  %457 = vmatmul.mubr.bf16.gmra.mrb[0].mxu0 %v354
  %v458 = vpop.f32.mrb[0].mxu0
  %v459 = vadd.f32 %v375, %v458
  %v460 = vpop.f32.mrb[0].mxu0
  %v461 = vpop.f32.mrb[0].mxu0
  %v462 = vadd.f32 %v375, %v461
  %v463 = vpop.f32.mrb[0].mxu0
  %464 = vmatprep.mubr.bf16.mxu0 0
  %465 = vmatmul.mubr.bf16.gmra.mrb[0].mxu0 %v355
  %v466 = vpop.f32.mrb[0].mxu0
  %v467 = vadd.f32 %v375, %v466
  %v468 = vpop.f32.mrb[0].mxu0
  %v469 = vpop.f32.mrb[0].mxu0
  %v470 = vadd.f32 %v375, %v469
  %v471 = vpop.f32.mrb[0].mxu0
  %472 = vdwg.mxu0
  %v473 = vmax.f32 %v459, 0.0
  %v474 = vmax.f32 %v462, 0.0
  %v475 = vmax.f32 %v467, 0.0
  %v476 = vmax.f32 %v470, 0.0
  %v477 = vlaneseq
  %v478 = vshrl.u32 %v477, 7
  %v479 = vsub.s32 3, %v478
  %v480 = vrot.slane %v21, %v479
  %v481 = vadd.f32 %v473, %v480
  %v482 = vadd.f32 %v474, %v480
  %v483 = vadd.f32 %v475, %v480
  %v484 = vadd.f32 %v476, %v480
  %485 = vst [vmem:[%s5] sm:$0xff] %v481
  %486 = vst [vmem:[%s5 + $0x8] sm:$0xff] %v482
  %487 = vst [vmem:[%s5 + $0x10] sm:$0xff] %v483
  %488 = vst [vmem:[%s5 + $0x18] sm:$0xff] %v484
  // Predicated region
  $region22: #{goal_state_forward.5} parent=0 // pred_check
    _
  $region23: #{goal_state_forward.5} parent=0 // pred_check_branch
    %490 = sbr.rel (0) target = $region25
  $region24: #{goal_state_forward.5} parent=0 // pred_region
    _
  $region25: #{goal_state_forward.5} parent=0 // pred_fallthru
    _
  // Predicated region
  $region26: #{goal_state_forward.5} parent=0 // pred_check
    _
  $region27: #{goal_state_forward.5} parent=0 // pred_check_branch
    %492 = sbr.rel (0) target = $region29
  $region28: #{goal_state_forward.5} parent=0 // pred_region
    _
  $region29: #{goal_state_forward.5} parent=0 // pred_fallthru
    _

</llo_original>
